<compile_context>
chip_gen: v5e
topology: v5e:2x2
jax: 0.10.0
libtpu: 0.0.40
codegen_flags: <defaults>
</compile_context>

<pallas_src>
import math

import jax
import jax.numpy as jnp
from jax.experimental import pallas as pl
from jax.experimental.pallas import tpu as pltpu


def _round_up(x, m):
    return (x + m - 1) // m * m


def matmul_bias_relu_kernel(x_ref, w_ref, b_ref, o_ref):
    """o = relu(x @ w + b) for one (TM, K) x (K, N) tile; f32 accumulation on MXU."""
    acc = jnp.dot(x_ref[...], w_ref[...], preferred_element_type=jnp.float32)
    acc = acc + b_ref[...]                      # (1, N) bias broadcast over rows
    o_ref[...] = jnp.maximum(acc, 0.0).astype(o_ref.dtype)


def matmul_bias_relu(x, w, b, *, tm=256):
    """Fused GEMM + bias + ReLU.  x: (M, K), w: (K, N), b: (1, N) -> (M, N)."""
    M, K = x.shape
    Kw, N = w.shape
    assert K == Kw
    tm = min(tm, _round_up(M, 8))               # small-M layers collapse to one block
    Mp = _round_up(M, tm)
    if Mp != M:                                 # pad rows so the grid divides evenly
        x = jnp.pad(x, ((0, Mp - M), (0, 0)))

    out = pl.pallas_call(
        matmul_bias_relu_kernel,
        out_shape=jax.ShapeDtypeStruct((Mp, N), x.dtype),
        grid_spec=pltpu.PrefetchScalarGridSpec(
            num_scalar_prefetch=0,
            grid=(Mp // tm,),
            in_specs=[
                pl.BlockSpec((tm, K), lambda i: (i, 0)),   # row tile of patches
                pl.BlockSpec((K, N), lambda i: (0, 0)),    # whole weight, resident
                pl.BlockSpec((1, N), lambda i: (0, 0)),    # bias, resident
            ],
            out_specs=pl.BlockSpec((tm, N), lambda i: (i, 0)),
        ),
        compiler_params=pltpu.CompilerParams(
            dimension_semantics=("parallel",)),            # row tiles are independent
    )(x, w, b)
    return out[:M] if Mp != M else out


def conv2d_relu(x_nhwc, w_oihw, b, *, stride):
    """VALID conv + bias + ReLU via im2col (wrapper) + fused Pallas GEMM."""
    B, H, W, C = x_nhwc.shape
    Cout, Cin, KH, KW = w_oihw.shape
    OH = (H - KH) // stride + 1
    OW = (W - KW) // stride + 1
    cols = []
    for i in range(KH):
        for j in range(KW):
            cols.append(
                x_nhwc[:, i:i + (OH - 1) * stride + 1:stride,
                          j:j + (OW - 1) * stride + 1:stride, :])
    # feature index = (kh*KW + kw)*Cin + cin, matching the weight re-layout below
    patches = jnp.stack(cols, axis=3).reshape(B * OH * OW, KH * KW * Cin)
    w2d = jnp.transpose(w_oihw, (2, 3, 1, 0)).reshape(KH * KW * Cin, Cout)
    out = matmul_bias_relu(patches, w2d, b.reshape(1, Cout))
    return out.reshape(B, OH, OW, Cout)


@jax.jit
def cnn_block_forward(x_nchw, params):
    """Equivalent of CNNBlock.forward: (B, num_inputs, 84, 84) -> (B, output_size)."""
    w1, b1, w2, b2, w3, b3, wl, bl = params
    x = jnp.transpose(x_nchw, (0, 2, 3, 1))                 # NHWC (lane-dense channels)
    x = conv2d_relu(x, w1, b1, stride=4)                    # (B, 20, 20, 32)
    x = conv2d_relu(x, w2, b2, stride=2)                    # (B,  9,  9, 64)
    x = conv2d_relu(x, w3, b3, stride=1)                    # (B,  7,  7, 32)
    B = x.shape[0]
    x = jnp.transpose(x, (0, 3, 1, 2)).reshape(B, -1)       # torch .view order (C, H, W)
    return matmul_bias_relu(x, wl.T, bl.reshape(1, -1))     # (B, output_size)


def init_params(key, num_inputs, output_size):
    """Matches init_easy(gain=calculate_gain('relu'), bias=0): orthogonal W, zero b."""
    gain = math.sqrt(2.0)
    ortho = jax.nn.initializers.orthogonal(scale=gain)
    k1, k2, k3, k4 = jax.random.split(key, 4)

    def conv_w(k, cout, cin, kh, kw):
        # PyTorch orthogonal_ flattens (Cout, Cin*KH*KW); keep torch OIHW layout.
        return ortho(k, (cout, cin * kh * kw), jnp.float32).reshape(cout, cin, kh, kw)

    w1 = conv_w(k1, 32, num_inputs, 8, 8); b1 = jnp.zeros((32,), jnp.float32)
    w2 = conv_w(k2, 64, 32, 4, 4);         b2 = jnp.zeros((64,), jnp.float32)
    w3 = conv_w(k3, 32, 64, 3, 3);         b3 = jnp.zeros((32,), jnp.float32)
    wl = ortho(k4, (output_size, 32 * 7 * 7), jnp.float32)  # torch Linear layout
    bl = jnp.zeros((output_size,), jnp.float32)
    return (w1, b1, w2, b2, w3, b3, wl, bl)


def cnn_block_reference(x_nchw, params):
    """Pure-JAX reference with identical semantics (NCHW convs), for validation."""
    w1, b1, w2, b2, w3, b3, wl, bl = params
    dn = ("NCHW", "OIHW", "NCHW")
    hi = jax.lax.Precision.HIGHEST

    def conv(x, w, b, s):
        y = jax.lax.conv_general_dilated(x, w, (s, s), "VALID",
                                         dimension_numbers=dn, precision=hi)
        return jax.nn.relu(y + b.reshape(1, -1, 1, 1))

    x = conv(x_nchw, w1, b1, 4)
    x = conv(x, w2, b2, 2)
    x = conv(x, w3, b3, 1)
    x = x.reshape(x.shape[0], -1)
    return jax.nn.relu(jnp.dot(x, wl.T, precision=hi) + bl)


if __name__ == "__main__":
    num_inputs, output_size = 4, 32
    B, H, W = 2, 84, 84   # 84x84 input -> 7x7 before the 32*7*7 Linear, as in the module

    key = jax.random.PRNGKey(0)
    kp, kx = jax.random.split(key)
    params = init_params(kp, num_inputs, output_size)
    x = jax.random.normal(kx, (B, num_inputs, H, W), jnp.float32)

    out = cnn_block_forward(x, params)
    jax.block_until_ready(out)
    assert out.shape == (B, output_size)

    ref = cnn_block_reference(x, params)
    # Tolerance covers possible reduced-precision MXU passes vs the HIGHEST-precision ref.
    assert jnp.allclose(out, ref, atol=2e-2, rtol=2e-2)
    assert bool(jnp.all(out >= 0.0))   # ReLU epilogue

    print("KERNEL_OK")
</pallas_src>

<mosaic_0001>
module attributes {stable_mosaic.version = 11 : i64} {
  func.func @matmul_bias_relu_kernel(%arg0: i32, %arg1: memref<256x256xf32, #tpu.memory_space<vmem>>, %arg2: memref<256x32xf32, #tpu.memory_space<vmem>>, %arg3: memref<1x32xf32, #tpu.memory_space<vmem>>, %arg4: memref<256x32xf32, #tpu.memory_space<vmem>>) attributes {dimension_semantics = [#tpu.dimension_semantics<parallel>], iteration_bounds = array<i64: 4>, scalar_prefetch = 0 : i64, scratch_operands = 0 : i64, tpu.core_type = #tpu.core_type<tc>, window_params = [{transform_indices = @transform_0, window_bounds = array<i64: 256, 256>}, {pipeline_mode = #tpu.pipeline_mode<synchronous>, transform_indices = @transform_1, window_bounds = array<i64: 256, 32>}, {pipeline_mode = #tpu.pipeline_mode<synchronous>, transform_indices = @transform_2, window_bounds = array<i64: 1, 32>}, {transform_indices = @transform_3, window_bounds = array<i64: 256, 32>}]} {
    %c0 = arith.constant 0 : index
    %c0_0 = arith.constant 0 : index
    %0 = vector.load %arg1[%c0, %c0_0] : memref<256x256xf32, #tpu.memory_space<vmem>>, vector<256x256xf32>
    %c0_1 = arith.constant 0 : index
    %c0_2 = arith.constant 0 : index
    %1 = vector.load %arg2[%c0_1, %c0_2] : memref<256x32xf32, #tpu.memory_space<vmem>>, vector<256x32xf32>
    %cst = arith.constant dense<0.000000e+00> : vector<256x32xf32>
    %2 = tpu.matmul %0, %1, %cst {dimension_numbers = #tpu.dot_dimension_numbers<[1], [0], [0], [1], [0, 0, 1, 1], [], []>} : vector<256x256xf32>, vector<256x32xf32>, vector<256x32xf32> -> vector<256x32xf32>
    %c0_3 = arith.constant 0 : index
    %c0_4 = arith.constant 0 : index
    %3 = vector.load %arg3[%c0_3, %c0_4] : memref<1x32xf32, #tpu.memory_space<vmem>>, vector<1x32xf32>
    %4 = vector.broadcast %3 : vector<1x32xf32> to vector<256x32xf32>
    %5 = arith.addf %2, %4 : vector<256x32xf32>
    %cst_5 = arith.constant 0.000000e+00 : f32
    %6 = vector.broadcast %cst_5 : f32 to vector<256x32xf32>
    %7 = arith.maximumf %5, %6 : vector<256x32xf32>
    %c0_6 = arith.constant 0 : index
    %c0_7 = arith.constant 0 : index
    %8 = vector.load %arg4[%c0_6, %c0_7] : memref<256x32xf32, #tpu.memory_space<vmem>>, vector<256x32xf32>
    tpu.vector_store %arg4[%c0_6, %c0_7], %7 {strides = array<i32>} : memref<256x32xf32, #tpu.memory_space<vmem>>, vector<256x32xf32>,
    return
  }
  func.func @transform_0(%arg0: i32) -> (i32, i32) {
    %c0_i32 = arith.constant 0 : i32
    %c0_i32_0 = arith.constant 0 : i32
    return %arg0, %c0_i32 : i32, i32
  }
  func.func @transform_1(%arg0: i32) -> (i32, i32) {
    %c0_i32 = arith.constant 0 : i32
    %c0_i32_0 = arith.constant 0 : i32
    %c0_i32_1 = arith.constant 0 : i32
    return %c0_i32, %c0_i32_0 : i32, i32
  }
  func.func @transform_2(%arg0: i32) -> (i32, i32) {
    %c0_i32 = arith.constant 0 : i32
    %c0_i32_0 = arith.constant 0 : i32
    %c0_i32_1 = arith.constant 0 : i32
    return %c0_i32, %c0_i32_0 : i32, i32
  }
  func.func @transform_3(%arg0: i32) -> (i32, i32) {
    %c0_i32 = arith.constant 0 : i32
    %c0_i32_0 = arith.constant 0 : i32
    return %arg0, %c0_i32 : i32, i32
  }
}

module attributes {stable_mosaic.version = 11 : i64} {
  func.func @matmul_bias_relu_kernel(%arg0: i32, %arg1: memref<168x512xf32, #tpu.memory_space<vmem>>, %arg2: memref<512x64xf32, #tpu.memory_space<vmem>>, %arg3: memref<1x64xf32, #tpu.memory_space<vmem>>, %arg4: memref<168x64xf32, #tpu.memory_space<vmem>>) attributes {dimension_semantics = [#tpu.dimension_semantics<parallel>], iteration_bounds = array<i64: 1>, scalar_prefetch = 0 : i64, scratch_operands = 0 : i64, tpu.core_type = #tpu.core_type<tc>, window_params = [{transform_indices = @transform_0, window_bounds = array<i64: 168, 512>}, {pipeline_mode = #tpu.pipeline_mode<synchronous>, transform_indices = @transform_1, window_bounds = array<i64: 512, 64>}, {pipeline_mode = #tpu.pipeline_mode<synchronous>, transform_indices = @transform_2, window_bounds = array<i64: 1, 64>}, {transform_indices = @transform_3, window_bounds = array<i64: 168, 64>}]} {
    %c0 = arith.constant 0 : index
    %c0_0 = arith.constant 0 : index
    %0 = vector.load %arg1[%c0, %c0_0] : memref<168x512xf32, #tpu.memory_space<vmem>>, vector<168x512xf32>
    %c0_1 = arith.constant 0 : index
    %c0_2 = arith.constant 0 : index
    %1 = vector.load %arg2[%c0_1, %c0_2] : memref<512x64xf32, #tpu.memory_space<vmem>>, vector<512x64xf32>
    %cst = arith.constant dense<0.000000e+00> : vector<168x64xf32>
    %2 = tpu.matmul %0, %1, %cst {dimension_numbers = #tpu.dot_dimension_numbers<[1], [0], [0], [1], [0, 0, 1, 1], [], []>} : vector<168x512xf32>, vector<512x64xf32>, vector<168x64xf32> -> vector<168x64xf32>
    %c0_3 = arith.constant 0 : index
    %c0_4 = arith.constant 0 : index
    %3 = vector.load %arg3[%c0_3, %c0_4] : memref<1x64xf32, #tpu.memory_space<vmem>>, vector<1x64xf32>
    %4 = vector.broadcast %3 : vector<1x64xf32> to vector<168x64xf32>
    %5 = arith.addf %2, %4 : vector<168x64xf32>
    %cst_5 = arith.constant 0.000000e+00 : f32
    %6 = vector.broadcast %cst_5 : f32 to vector<168x64xf32>
    %7 = arith.maximumf %5, %6 : vector<168x64xf32>
    %c0_6 = arith.constant 0 : index
    %c0_7 = arith.constant 0 : index
    %8 = vector.load %arg4[%c0_6, %c0_7] : memref<168x64xf32, #tpu.memory_space<vmem>>, vector<168x64xf32>
    tpu.vector_store %arg4[%c0_6, %c0_7], %7 {strides = array<i32>} : memref<168x64xf32, #tpu.memory_space<vmem>>, vector<168x64xf32>,
    return
  }
  func.func @transform_0(%arg0: i32) -> (i32, i32) {
    %c0_i32 = arith.constant 0 : i32
    %c0_i32_0 = arith.constant 0 : i32
    return %arg0, %c0_i32 : i32, i32
  }
  func.func @transform_1(%arg0: i32) -> (i32, i32) {
    %c0_i32 = arith.constant 0 : i32
    %c0_i32_0 = arith.constant 0 : i32
    %c0_i32_1 = arith.constant 0 : i32
    return %c0_i32, %c0_i32_0 : i32, i32
  }
  func.func @transform_2(%arg0: i32) -> (i32, i32) {
    %c0_i32 = arith.constant 0 : i32
    %c0_i32_0 = arith.constant 0 : i32
    %c0_i32_1 = arith.constant 0 : i32
    return %c0_i32, %c0_i32_0 : i32, i32
  }
  func.func @transform_3(%arg0: i32) -> (i32, i32) {
    %c0_i32 = arith.constant 0 : i32
    %c0_i32_0 = arith.constant 0 : i32
    return %arg0, %c0_i32 : i32, i32
  }
}

module attributes {stable_mosaic.version = 11 : i64} {
  func.func @matmul_bias_relu_kernel(%arg0: i32, %arg1: memref<104x576xf32, #tpu.memory_space<vmem>>, %arg2: memref<576x32xf32, #tpu.memory_space<vmem>>, %arg3: memref<1x32xf32, #tpu.memory_space<vmem>>, %arg4: memref<104x32xf32, #tpu.memory_space<vmem>>) attributes {dimension_semantics = [#tpu.dimension_semantics<parallel>], iteration_bounds = array<i64: 1>, scalar_prefetch = 0 : i64, scratch_operands = 0 : i64, tpu.core_type = #tpu.core_type<tc>, window_params = [{transform_indices = @transform_0, window_bounds = array<i64: 104, 576>}, {pipeline_mode = #tpu.pipeline_mode<synchronous>, transform_indices = @transform_1, window_bounds = array<i64: 576, 32>}, {pipeline_mode = #tpu.pipeline_mode<synchronous>, transform_indices = @transform_2, window_bounds = array<i64: 1, 32>}, {transform_indices = @transform_3, window_bounds = array<i64: 104, 32>}]} {
    %c0 = arith.constant 0 : index
    %c0_0 = arith.constant 0 : index
    %0 = vector.load %arg1[%c0, %c0_0] : memref<104x576xf32, #tpu.memory_space<vmem>>, vector<104x576xf32>
    %c0_1 = arith.constant 0 : index
    %c0_2 = arith.constant 0 : index
    %1 = vector.load %arg2[%c0_1, %c0_2] : memref<576x32xf32, #tpu.memory_space<vmem>>, vector<576x32xf32>
    %cst = arith.constant dense<0.000000e+00> : vector<104x32xf32>
    %2 = tpu.matmul %0, %1, %cst {dimension_numbers = #tpu.dot_dimension_numbers<[1], [0], [0], [1], [0, 0, 1, 1], [], []>} : vector<104x576xf32>, vector<576x32xf32>, vector<104x32xf32> -> vector<104x32xf32>
    %c0_3 = arith.constant 0 : index
    %c0_4 = arith.constant 0 : index
    %3 = vector.load %arg3[%c0_3, %c0_4] : memref<1x32xf32, #tpu.memory_space<vmem>>, vector<1x32xf32>
    %4 = vector.broadcast %3 : vector<1x32xf32> to vector<104x32xf32>
    %5 = arith.addf %2, %4 : vector<104x32xf32>
    %cst_5 = arith.constant 0.000000e+00 : f32
    %6 = vector.broadcast %cst_5 : f32 to vector<104x32xf32>
    %7 = arith.maximumf %5, %6 : vector<104x32xf32>
    %c0_6 = arith.constant 0 : index
    %c0_7 = arith.constant 0 : index
    %8 = vector.load %arg4[%c0_6, %c0_7] : memref<104x32xf32, #tpu.memory_space<vmem>>, vector<104x32xf32>
    tpu.vector_store %arg4[%c0_6, %c0_7], %7 {strides = array<i32>} : memref<104x32xf32, #tpu.memory_space<vmem>>, vector<104x32xf32>,
    return
  }
  func.func @transform_0(%arg0: i32) -> (i32, i32) {
    %c0_i32 = arith.constant 0 : i32
    %c0_i32_0 = arith.constant 0 : i32
    return %arg0, %c0_i32 : i32, i32
  }
  func.func @transform_1(%arg0: i32) -> (i32, i32) {
    %c0_i32 = arith.constant 0 : i32
    %c0_i32_0 = arith.constant 0 : i32
    %c0_i32_1 = arith.constant 0 : i32
    return %c0_i32, %c0_i32_0 : i32, i32
  }
  func.func @transform_2(%arg0: i32) -> (i32, i32) {
    %c0_i32 = arith.constant 0 : i32
    %c0_i32_0 = arith.constant 0 : i32
    %c0_i32_1 = arith.constant 0 : i32
    return %c0_i32, %c0_i32_0 : i32, i32
  }
  func.func @transform_3(%arg0: i32) -> (i32, i32) {
    %c0_i32 = arith.constant 0 : i32
    %c0_i32_0 = arith.constant 0 : i32
    return %arg0, %c0_i32 : i32, i32
  }
}

module attributes {stable_mosaic.version = 11 : i64} {
  func.func @matmul_bias_relu_kernel(%arg0: i32, %arg1: memref<8x1568xf32, #tpu.memory_space<vmem>>, %arg2: memref<1568x32xf32, #tpu.memory_space<vmem>>, %arg3: memref<1x32xf32, #tpu.memory_space<vmem>>, %arg4: memref<8x32xf32, #tpu.memory_space<vmem>>) attributes {dimension_semantics = [#tpu.dimension_semantics<parallel>], iteration_bounds = array<i64: 1>, scalar_prefetch = 0 : i64, scratch_operands = 0 : i64, tpu.core_type = #tpu.core_type<tc>, window_params = [{transform_indices = @transform_0, window_bounds = array<i64: 8, 1568>}, {pipeline_mode = #tpu.pipeline_mode<synchronous>, transform_indices = @transform_1, window_bounds = array<i64: 1568, 32>}, {pipeline_mode = #tpu.pipeline_mode<synchronous>, transform_indices = @transform_2, window_bounds = array<i64: 1, 32>}, {transform_indices = @transform_3, window_bounds = array<i64: 8, 32>}]} {
    %c0 = arith.constant 0 : index
    %c0_0 = arith.constant 0 : index
    %0 = vector.load %arg1[%c0, %c0_0] : memref<8x1568xf32, #tpu.memory_space<vmem>>, vector<8x1568xf32>
    %c0_1 = arith.constant 0 : index
    %c0_2 = arith.constant 0 : index
    %1 = vector.load %arg2[%c0_1, %c0_2] : memref<1568x32xf32, #tpu.memory_space<vmem>>, vector<1568x32xf32>
    %cst = arith.constant dense<0.000000e+00> : vector<8x32xf32>
    %2 = tpu.matmul %0, %1, %cst {dimension_numbers = #tpu.dot_dimension_numbers<[1], [0], [0], [1], [0, 0, 1, 1], [], []>} : vector<8x1568xf32>, vector<1568x32xf32>, vector<8x32xf32> -> vector<8x32xf32>
    %c0_3 = arith.constant 0 : index
    %c0_4 = arith.constant 0 : index
    %3 = vector.load %arg3[%c0_3, %c0_4] : memref<1x32xf32, #tpu.memory_space<vmem>>, vector<1x32xf32>
    %4 = vector.broadcast %3 : vector<1x32xf32> to vector<8x32xf32>
    %5 = arith.addf %2, %4 : vector<8x32xf32>
    %cst_5 = arith.constant 0.000000e+00 : f32
    %6 = vector.broadcast %cst_5 : f32 to vector<8x32xf32>
    %7 = arith.maximumf %5, %6 : vector<8x32xf32>
    %c0_6 = arith.constant 0 : index
    %c0_7 = arith.constant 0 : index
    %8 = vector.load %arg4[%c0_6, %c0_7] : memref<8x32xf32, #tpu.memory_space<vmem>>, vector<8x32xf32>
    tpu.vector_store %arg4[%c0_6, %c0_7], %7 {strides = array<i32>} : memref<8x32xf32, #tpu.memory_space<vmem>>, vector<8x32xf32>,
    return
  }
  func.func @transform_0(%arg0: i32) -> (i32, i32) {
    %c0_i32 = arith.constant 0 : i32
    %c0_i32_0 = arith.constant 0 : i32
    return %arg0, %c0_i32 : i32, i32
  }
  func.func @transform_1(%arg0: i32) -> (i32, i32) {
    %c0_i32 = arith.constant 0 : i32
    %c0_i32_0 = arith.constant 0 : i32
    %c0_i32_1 = arith.constant 0 : i32
    return %c0_i32, %c0_i32_0 : i32, i32
  }
  func.func @transform_2(%arg0: i32) -> (i32, i32) {
    %c0_i32 = arith.constant 0 : i32
    %c0_i32_0 = arith.constant 0 : i32
    %c0_i32_1 = arith.constant 0 : i32
    return %c0_i32, %c0_i32_0 : i32, i32
  }
  func.func @transform_3(%arg0: i32) -> (i32, i32) {
    %c0_i32 = arith.constant 0 : i32
    %c0_i32_0 = arith.constant 0 : i32
    return %arg0, %c0_i32 : i32, i32
  }
}

</mosaic_0001>

<llo_original>
// kernel: cnn_block_forward.4
$region0: #{cnn_block_forward.4}
  #allocation0 [shape = 'u32[]', space=smem, size = 0x4, offset = 0x4, fixed_abs, tag = 'smem constant byte address 0x4 - core index']
  #allocation1 [shape = 'u32[72,128]{1,0:T(1,128)}', space=vmem, size = 0x9000, scoped, tag = 'internal scratch']
  %s0 = inlined_call_operand.vmem [shape: f32[1024,256], index: 0, kind: input, shape index: {}]
  %s1 = inlined_call_operand.vmem [shape: f32[256,32], index: 1, kind: input, shape index: {}]
  %s2 = inlined_call_operand.vmem [shape: f32[1,32], index: 2, kind: input, shape index: {}]
  %s3 = inlined_call_operand.vmem [shape: f32[1024,32], index: 3, kind: output, shape index: {}]
  %s4 = sld [smem:[#allocation0]]
  $region45: #{cnn_block_forward.4} parent=0
    _
  %s6 = ssub.s32 1, %s4
  %s7 = scalar_select 0, %s6, %s4
  loop: start=0, step=1, limit=6
  $region2: #{cnn_block_forward.4} parent=0 // loop_pre_header
    _
  $region3: #{cnn_block_forward.4} parent=0 // loop_header
    %s9 = sphi 0, %s13
    %p10 = scmp.ge.s32.totalorder %s9, 6
    %s19 = sphi 0, %s21
    %s22 = sphi 0, %s19
    %s23 = sphi 0, %s22
    %s39 = sphi 0, %s23
    %s43 = sphi 0, %s43
    %s45 = sphi 0, %s43
    %s46 = sphi 0, %s45
    %s60 = sphi 0, %s46
    %s64 = sphi 0, %s64
    %s66 = sphi 0, %s64
    %s67 = sphi 0, %s66
    %s81 = sphi 0, %s67
    %s87 = sphi 0, %s89
    %s90 = sphi 0, %s87
    %s91 = sphi 0, %s90
    %s107 = sphi 0, %s91
  $region4: #{cnn_block_forward.4} parent=0 // loop_header_branch
    %12 = sbr.rel (%p10) target = $region8
  $region5: #{cnn_block_forward.4} parent=0 // loop_body
    %s14 = ssub.s32 %s9, 1
    %s15 = ssub.s32 %s9, 2
    %s16 = sadd.s32 %s9, 1
    %s17 = ssub.s32 %s9, %s16
    %p18 = scmp.eq.s32.totalorder %s17, 0
    %s20 = sadd.s32 %s19, 1
    %s21 = scalar_select %p18, %s19, %s20
    %p24 = pneg %p18
    %p25 = scmp.eq.s32.totalorder %s9, 3
    %p26 = por %p24, %p25
    %p27 = scmp.ne.s32.totalorder %s19, %s22
    %p28 = scmp.eq.s32.totalorder %s9, 0
    %p29 = por %p27, %p28
    %p30 = scmp.ne.s32.totalorder %s19, %s22
    %p31 = scmp.eq.s32.totalorder %s14, 3
    %p32 = por %p30, %p31
    %p33 = scmp.ne.s32.totalorder %s22, %s23
    %p34 = scmp.eq.s32.totalorder %s14, 0
    %p35 = por %p33, %p34
    %p36 = scmp.ne.s32.totalorder %s22, %s23
    %p37 = scmp.eq.s32.totalorder %s15, 3
    %p38 = por %p36, %p37
    %p40 = scmp.ne.s32.totalorder %s23, %s39
    %p41 = scmp.eq.s32.totalorder %s15, 0
    %p42 = por %p40, %p41
    %s44 = sadd.s32 %s43, 1
    %p47 = scmp.eq.s32.totalorder %s9, 3
    %p48 = scmp.ne.s32.totalorder %s43, %s45
    %p49 = scmp.eq.s32.totalorder %s9, 0
    %p50 = por %p48, %p49
    %p51 = scmp.ne.s32.totalorder %s43, %s45
    %p52 = scmp.eq.s32.totalorder %s14, 3
    %p53 = por %p51, %p52
    %p54 = scmp.ne.s32.totalorder %s45, %s46
    %p55 = scmp.eq.s32.totalorder %s14, 0
    %p56 = por %p54, %p55
    %p57 = scmp.ne.s32.totalorder %s45, %s46
    %p58 = scmp.eq.s32.totalorder %s15, 3
    %p59 = por %p57, %p58
    %p61 = scmp.ne.s32.totalorder %s46, %s60
    %p62 = scmp.eq.s32.totalorder %s15, 0
    %p63 = por %p61, %p62
    %s65 = sadd.s32 %s64, 1
    %p68 = scmp.eq.s32.totalorder %s9, 3
    %p69 = scmp.ne.s32.totalorder %s64, %s66
    %p70 = scmp.eq.s32.totalorder %s9, 0
    %p71 = por %p69, %p70
    %p72 = scmp.ne.s32.totalorder %s64, %s66
    %p73 = scmp.eq.s32.totalorder %s14, 3
    %p74 = por %p72, %p73
    %p75 = scmp.ne.s32.totalorder %s66, %s67
    %p76 = scmp.eq.s32.totalorder %s14, 0
    %p77 = por %p75, %p76
    %p78 = scmp.ne.s32.totalorder %s66, %s67
    %p79 = scmp.eq.s32.totalorder %s15, 3
    %p80 = por %p78, %p79
    %p82 = scmp.ne.s32.totalorder %s67, %s81
    %p83 = scmp.eq.s32.totalorder %s15, 0
    %p84 = por %p82, %p83
    %s85 = ssub.s32 %s9, %s16
    %p86 = scmp.eq.s32.totalorder %s85, 0
    %s88 = sadd.s32 %s87, 1
    %s89 = scalar_select %p86, %s87, %s88
    %p92 = pneg %p86
    %p93 = scmp.eq.s32.totalorder %s9, 3
    %p94 = por %p92, %p93
    %p95 = scmp.ne.s32.totalorder %s87, %s90
    %p96 = scmp.eq.s32.totalorder %s9, 0
    %p97 = por %p95, %p96
    %p98 = scmp.ne.s32.totalorder %s87, %s90
    %p99 = scmp.eq.s32.totalorder %s14, 3
    %p100 = por %p98, %p99
    %p101 = scmp.ne.s32.totalorder %s90, %s91
    %p102 = scmp.eq.s32.totalorder %s14, 0
    %p103 = por %p101, %p102
    %p104 = scmp.ne.s32.totalorder %s90, %s91
    %p105 = scmp.eq.s32.totalorder %s15, 3
    %p106 = por %p104, %p105
    %p108 = scmp.ne.s32.totalorder %s91, %s107
    %p109 = scmp.eq.s32.totalorder %s15, 0
    %p110 = por %p108, %p109
    %p111 = scmp.le.s32.totalorder 1, %s9
    %p112 = scmp.lt.s32.totalorder %s9, 5
    %p113 = pnand %p111, %p112
    %p114 = pneg %p113
    // Predicated region
    $region9: #{cnn_block_forward.4} parent=5 // pred_check
      _
    $region10: #{cnn_block_forward.4} parent=5 // pred_check_branch
      %116 = sbr.rel (%p113) target = $region12
    $region11: #{cnn_block_forward.4} parent=5 // pred_region
      %s117 = ssub.s32 %s9, 1
      // Predicated region
      $region13: #{cnn_block_forward.4} parent=11 // pred_check
        %p118 = pneg %p56
      $region14: #{cnn_block_forward.4} parent=11 // pred_check_branch
        %120 = sbr.rel (%p118) target = $region16
      $region15: #{cnn_block_forward.4} parent=11 // pred_region
        _
      $region16: #{cnn_block_forward.4} parent=11 // pred_fallthru
        _
      // Predicated region
      $region17: #{cnn_block_forward.4} parent=11 // pred_check
        %p121 = pneg %p77
      $region18: #{cnn_block_forward.4} parent=11 // pred_check_branch
        %123 = sbr.rel (%p121) target = $region20
      $region19: #{cnn_block_forward.4} parent=11 // pred_region
        _
      $region20: #{cnn_block_forward.4} parent=11 // pred_fallthru
        _
    $region12: #{cnn_block_forward.4} parent=5 // pred_fallthru
      _
    %p124 = scmp.lt.s32.totalorder %s9, 4
    // Predicated region
    $region21: #{cnn_block_forward.4} parent=5 // pred_check
      %p125 = pneg %p124
    $region22: #{cnn_block_forward.4} parent=5 // pred_check_branch
      %127 = sbr.rel (%p125) target = $region24
    $region23: #{cnn_block_forward.4} parent=5 // pred_region
      // Predicated region
      $region25: #{cnn_block_forward.4} parent=23 // pred_check
        %p128 = pneg %p29
      $region26: #{cnn_block_forward.4} parent=23 // pred_check_branch
        %130 = sbr.rel (%p128) target = $region28
      $region27: #{cnn_block_forward.4} parent=23 // pred_region
        %s131 = smul.u32 32, %s9
        %p132 = scmp.lt.s32.totalorder %s131, 127
        %s133 = scalar_select %p132, %s131, 127
        %s134 = smul.addr %s133, 2
        %s135 = smul.addr %s134, 8
        %s136 = scalar_lea.vmem %s0, %s135
        %s137 = smul.u32 32, %s9
      $region28: #{cnn_block_forward.4} parent=23 // pred_fallthru
        _
    $region24: #{cnn_block_forward.4} parent=5 // pred_fallthru
      _
    %p138 = scmp.le.s32.totalorder 1, %s9
    %p139 = scmp.lt.s32.totalorder %s9, 5
    %p140 = pnand %p138, %p139
    %p141 = pneg %p140
    // Predicated region
    $region29: #{cnn_block_forward.4} parent=5 // pred_check
      _
    $region30: #{cnn_block_forward.4} parent=5 // pred_check_branch
      %143 = sbr.rel (%p140) target = $region32
    $region31: #{cnn_block_forward.4} parent=5 // pred_region
      %s144 = ssub.s32 %s9, 1
      %s145 = smul.u32 32, %s14
      %p146 = scmp.lt.s32.totalorder %s145, 127
      %s147 = scalar_select %p146, %s145, 127
      %s148 = smul.addr %s147, 2
      %s149 = smul.addr %s148, 8
      %s150 = scalar_lea.vmem %s0, %s149
      %p151 = pneg %p35
      %p152 = pneg %p32
      %p153 = pneg %p56
      %p154 = pneg %p53
      %p155 = pneg %p77
      %p156 = pneg %p74
      %p157 = pneg %p103
      %p158 = pneg %p100
      %s159 = smul.u32 32, %s14
      %p160 = scmp.lt.s32.totalorder %s159, 127
      %s161 = scalar_select %p160, %s159, 127
      %s162 = smul.addr %s161, 8
      %s163 = scalar_lea.vmem %s3, %s162
      %s164 = smul.u32 32, %s14
      %p165 = scmp.lt.s32.totalorder %s164, 127
      %s166 = scalar_select %p165, %s164, 127
      %s167 = smul.addr %s166, 2
      %s168 = smul.addr %s167, 8
      %s169 = scalar_lea.vmem %s0, %s168
      %s170 = smul.u32 32, %s14
      %s171 = smul.u32 32, %s14
      %p172 = scmp.lt.s32.totalorder %s171, 127
      %s173 = scalar_select %p172, %s171, 127
      %s174 = smul.addr %s173, 8
      %s175 = scalar_lea.vmem %s3, %s174
      %s176 = smul.u32 32, %s14
      %v177 = vld [vmem:[%s169] sm:$0xff]
      %v178 = vld [vmem:[%s169 + $0x8] sm:$0xff]
      %v179 = vld [vmem:[%s169 + $0x10] sm:$0xff]
      %v180 = vld [vmem:[%s169 + $0x18] sm:$0xff]
      %v181 = vld [vmem:[%s169 + $0x20] sm:$0xff]
      %v182 = vld [vmem:[%s169 + $0x28] sm:$0xff]
      %v183 = vld [vmem:[%s169 + $0x30] sm:$0xff]
      %v184 = vld [vmem:[%s169 + $0x38] sm:$0xff]
      %v185 = vld [vmem:[%s169 + $0x40] sm:$0xff]
      %v186 = vld [vmem:[%s169 + $0x48] sm:$0xff]
      %v187 = vld [vmem:[%s169 + $0x50] sm:$0xff]
      %v188 = vld [vmem:[%s169 + $0x58] sm:$0xff]
      %v189 = vld [vmem:[%s169 + $0x60] sm:$0xff]
      %v190 = vld [vmem:[%s169 + $0x68] sm:$0xff]
      %v191 = vld [vmem:[%s169 + $0x70] sm:$0xff]
      %v192 = vld [vmem:[%s169 + $0x78] sm:$0xff]
      %v193 = vld [vmem:[%s169 + $0x80] sm:$0xff]
      %v194 = vld [vmem:[%s169 + $0x88] sm:$0xff]
      %v195 = vld [vmem:[%s169 + $0x90] sm:$0xff]
      %v196 = vld [vmem:[%s169 + $0x98] sm:$0xff]
      %v197 = vld [vmem:[%s169 + $0xa0] sm:$0xff]
      %v198 = vld [vmem:[%s169 + $0xa8] sm:$0xff]
      %v199 = vld [vmem:[%s169 + $0xb0] sm:$0xff]
      %v200 = vld [vmem:[%s169 + $0xb8] sm:$0xff]
      %v201 = vld [vmem:[%s169 + $0xc0] sm:$0xff]
      %v202 = vld [vmem:[%s169 + $0xc8] sm:$0xff]
      %v203 = vld [vmem:[%s169 + $0xd0] sm:$0xff]
      %v204 = vld [vmem:[%s169 + $0xd8] sm:$0xff]
      %v205 = vld [vmem:[%s169 + $0xe0] sm:$0xff]
      %v206 = vld [vmem:[%s169 + $0xe8] sm:$0xff]
      %v207 = vld [vmem:[%s169 + $0xf0] sm:$0xff]
      %v208 = vld [vmem:[%s169 + $0xf8] sm:$0xff]
      %v209 = vld [vmem:[%s169 + $0x100] sm:$0xff]
      %v210 = vld [vmem:[%s169 + $0x108] sm:$0xff]
      %v211 = vld [vmem:[%s169 + $0x110] sm:$0xff]
      %v212 = vld [vmem:[%s169 + $0x118] sm:$0xff]
      %v213 = vld [vmem:[%s169 + $0x120] sm:$0xff]
      %v214 = vld [vmem:[%s169 + $0x128] sm:$0xff]
      %v215 = vld [vmem:[%s169 + $0x130] sm:$0xff]
      %v216 = vld [vmem:[%s169 + $0x138] sm:$0xff]
      %v217 = vld [vmem:[%s169 + $0x140] sm:$0xff]
      %v218 = vld [vmem:[%s169 + $0x148] sm:$0xff]
      %v219 = vld [vmem:[%s169 + $0x150] sm:$0xff]
      %v220 = vld [vmem:[%s169 + $0x158] sm:$0xff]
      %v221 = vld [vmem:[%s169 + $0x160] sm:$0xff]
      %v222 = vld [vmem:[%s169 + $0x168] sm:$0xff]
      %v223 = vld [vmem:[%s169 + $0x170] sm:$0xff]
      %v224 = vld [vmem:[%s169 + $0x178] sm:$0xff]
      %v225 = vld [vmem:[%s169 + $0x180] sm:$0xff]
      %v226 = vld [vmem:[%s169 + $0x188] sm:$0xff]
      %v227 = vld [vmem:[%s169 + $0x190] sm:$0xff]
      %v228 = vld [vmem:[%s169 + $0x198] sm:$0xff]
      %v229 = vld [vmem:[%s169 + $0x1a0] sm:$0xff]
      %v230 = vld [vmem:[%s169 + $0x1a8] sm:$0xff]
      %v231 = vld [vmem:[%s169 + $0x1b0] sm:$0xff]
      %v232 = vld [vmem:[%s169 + $0x1b8] sm:$0xff]
      %v233 = vld [vmem:[%s169 + $0x1c0] sm:$0xff]
      %v234 = vld [vmem:[%s169 + $0x1c8] sm:$0xff]
      %v235 = vld [vmem:[%s169 + $0x1d0] sm:$0xff]
      %v236 = vld [vmem:[%s169 + $0x1d8] sm:$0xff]
      %v237 = vld [vmem:[%s169 + $0x1e0] sm:$0xff]
      %v238 = vld [vmem:[%s169 + $0x1e8] sm:$0xff]
      %v239 = vld [vmem:[%s169 + $0x1f0] sm:$0xff]
      %v240 = vld [vmem:[%s169 + $0x1f8] sm:$0xff]
      %v241 = vld [vmem:[%s1] sm:$0xff]
      %v242 = vld [vmem:[%s1 + $0x8] sm:$0xff]
      %v243 = vld [vmem:[%s1 + $0x10] sm:$0xff]
      %v244 = vld [vmem:[%s1 + $0x18] sm:$0xff]
      %v245 = vld [vmem:[%s1 + $0x20] sm:$0xff]
      %v246 = vld [vmem:[%s1 + $0x28] sm:$0xff]
      %v247 = vld [vmem:[%s1 + $0x30] sm:$0xff]
      %v248 = vld [vmem:[%s1 + $0x38] sm:$0xff]
      %v249 = vld [vmem:[%s1 + $0x40] sm:$0xff]
      %v250 = vld [vmem:[%s1 + $0x48] sm:$0xff]
      %v251 = vld [vmem:[%s1 + $0x50] sm:$0xff]
      %v252 = vld [vmem:[%s1 + $0x58] sm:$0xff]
      %v253 = vld [vmem:[%s1 + $0x60] sm:$0xff]
      %v254 = vld [vmem:[%s1 + $0x68] sm:$0xff]
      %v255 = vld [vmem:[%s1 + $0x70] sm:$0xff]
      %v256 = vld [vmem:[%s1 + $0x78] sm:$0xff]
      %v257 = vld [vmem:[%s1 + $0x80] sm:$0xff]
      %v258 = vld [vmem:[%s1 + $0x88] sm:$0xff]
      %v259 = vld [vmem:[%s1 + $0x90] sm:$0xff]
      %v260 = vld [vmem:[%s1 + $0x98] sm:$0xff]
      %v261 = vld [vmem:[%s1 + $0xa0] sm:$0xff]
      %v262 = vld [vmem:[%s1 + $0xa8] sm:$0xff]
      %v263 = vld [vmem:[%s1 + $0xb0] sm:$0xff]
      %v264 = vld [vmem:[%s1 + $0xb8] sm:$0xff]
      %v265 = vld [vmem:[%s1 + $0xc0] sm:$0xff]
      %v266 = vld [vmem:[%s1 + $0xc8] sm:$0xff]
      %v267 = vld [vmem:[%s1 + $0xd0] sm:$0xff]
      %v268 = vld [vmem:[%s1 + $0xd8] sm:$0xff]
      %v269 = vld [vmem:[%s1 + $0xe0] sm:$0xff]
      %v270 = vld [vmem:[%s1 + $0xe8] sm:$0xff]
      %v271 = vld [vmem:[%s1 + $0xf0] sm:$0xff]
      %v272 = vld [vmem:[%s1 + $0xf8] sm:$0xff]
      %v273 = vld [vmem:[%s2] sm:$0x1]
      %v275 = vperm.slane %v273, 0
      %277 = vmatpush.msra.mxu0 %v256
      %278 = vmatpush.msra.mxu0 %v255
      %279 = vmatpush.msra.mxu0 %v254
      %280 = vmatpush.msra.mxu0 %v253
      %281 = vmatpush.msra.mxu0 %v252
      %282 = vmatpush.msra.mxu0 %v251
      %283 = vmatpush.msra.mxu0 %v250
      %284 = vmatpush.msra.mxu0 %v249
      %285 = vmatpush.msra.mxu0 %v248
      %286 = vmatpush.msra.mxu0 %v247
      %287 = vmatpush.msra.mxu0 %v246
      %288 = vmatpush.msra.mxu0 %v245
      %289 = vmatpush.msra.mxu0 %v244
      %290 = vmatpush.msra.mxu0 %v243
      %291 = vmatpush.msra.mxu0 %v242
      %292 = vmatpush.msra.mxu0 %v241
      %293 = vmatmul.f32.gmra.mxu0 %v177
      %v294 = vpop.f32.mrf.mxu0
      %v295 = vadd.f32 %v275, %v294
      %296 = vmatmul.f32.gmra.mxu0 %v179
      %v297 = vpop.f32.mrf.mxu0
      %v298 = vadd.f32 %v275, %v297
      %299 = vmatmul.f32.gmra.mxu0 %v181
      %v300 = vpop.f32.mrf.mxu0
      %v301 = vadd.f32 %v275, %v300
      %302 = vmatmul.f32.gmra.mxu0 %v183
      %v303 = vpop.f32.mrf.mxu0
      %v304 = vadd.f32 %v275, %v303
      %305 = vmatmul.f32.gmra.mxu0 %v185
      %v306 = vpop.f32.mrf.mxu0
      %v307 = vadd.f32 %v275, %v306
      %308 = vmatmul.f32.gmra.mxu0 %v187
      %v309 = vpop.f32.mrf.mxu0
      %v310 = vadd.f32 %v275, %v309
      %311 = vmatmul.f32.gmra.mxu0 %v189
      %v312 = vpop.f32.mrf.mxu0
      %v313 = vadd.f32 %v275, %v312
      %314 = vmatmul.f32.gmra.mxu0 %v191
      %v315 = vpop.f32.mrf.mxu0
      %v316 = vadd.f32 %v275, %v315
      %317 = vmatmul.f32.gmra.mxu0 %v193
      %v318 = vpop.f32.mrf.mxu0
      %v319 = vadd.f32 %v275, %v318
      %320 = vmatmul.f32.gmra.mxu0 %v195
      %v321 = vpop.f32.mrf.mxu0
      %v322 = vadd.f32 %v275, %v321
      %323 = vmatmul.f32.gmra.mxu0 %v197
      %v324 = vpop.f32.mrf.mxu0
      %v325 = vadd.f32 %v275, %v324
      %326 = vmatmul.f32.gmra.mxu0 %v199
      %v327 = vpop.f32.mrf.mxu0
      %v328 = vadd.f32 %v275, %v327
      %329 = vmatmul.f32.gmra.mxu0 %v201
      %v330 = vpop.f32.mrf.mxu0
      %v331 = vadd.f32 %v275, %v330
      %332 = vmatmul.f32.gmra.mxu0 %v203
      %v333 = vpop.f32.mrf.mxu0
      %v334 = vadd.f32 %v275, %v333
      %335 = vmatmul.f32.gmra.mxu0 %v205
      %v336 = vpop.f32.mrf.mxu0
      %v337 = vadd.f32 %v275, %v336
      %338 = vmatmul.f32.gmra.mxu0 %v207
      %v339 = vpop.f32.mrf.mxu0
      %v340 = vadd.f32 %v275, %v339
      %341 = vmatmul.f32.gmra.mxu0 %v209
      %v342 = vpop.f32.mrf.mxu0
      %v343 = vadd.f32 %v275, %v342
      %344 = vmatmul.f32.gmra.mxu0 %v211
      %v345 = vpop.f32.mrf.mxu0
      %v346 = vadd.f32 %v275, %v345
      %347 = vmatmul.f32.gmra.mxu0 %v213
      %v348 = vpop.f32.mrf.mxu0
      %v349 = vadd.f32 %v275, %v348
      %350 = vmatmul.f32.gmra.mxu0 %v215
      %v351 = vpop.f32.mrf.mxu0
      %v352 = vadd.f32 %v275, %v351
      %353 = vmatmul.f32.gmra.mxu0 %v217
      %v354 = vpop.f32.mrf.mxu0
      %v355 = vadd.f32 %v275, %v354
      %356 = vmatmul.f32.gmra.mxu0 %v219
      %v357 = vpop.f32.mrf.mxu0
      %v358 = vadd.f32 %v275, %v357
      %359 = vmatmul.f32.gmra.mxu0 %v221
      %v360 = vpop.f32.mrf.mxu0
      %v361 = vadd.f32 %v275, %v360
      %362 = vmatmul.f32.gmra.mxu0 %v223
      %v363 = vpop.f32.mrf.mxu0
      %v364 = vadd.f32 %v275, %v363
      %365 = vmatmul.f32.gmra.mxu0 %v225
      %v366 = vpop.f32.mrf.mxu0
      %v367 = vadd.f32 %v275, %v366
      %368 = vmatmul.f32.gmra.mxu0 %v227
      %v369 = vpop.f32.mrf.mxu0
      %v370 = vadd.f32 %v275, %v369
      %371 = vmatmul.f32.gmra.mxu0 %v229
      %v372 = vpop.f32.mrf.mxu0
      %v373 = vadd.f32 %v275, %v372
      %374 = vmatmul.f32.gmra.mxu0 %v231
      %v375 = vpop.f32.mrf.mxu0
      %v376 = vadd.f32 %v275, %v375
      %377 = vmatmul.f32.gmra.mxu0 %v233
      %v378 = vpop.f32.mrf.mxu0
      %v379 = vadd.f32 %v275, %v378
      %380 = vmatmul.f32.gmra.mxu0 %v235
      %v381 = vpop.f32.mrf.mxu0
      %v382 = vadd.f32 %v275, %v381
      %383 = vmatmul.f32.gmra.mxu0 %v237
      %v384 = vpop.f32.mrf.mxu0
      %v385 = vadd.f32 %v275, %v384
      %386 = vmatmul.f32.gmra.mxu0 %v239
      %v387 = vpop.f32.mrf.mxu0
      %v388 = vadd.f32 %v275, %v387
      %389 = vdwg.mxu0
      %390 = vmatpush.msra.mxu0 %v272
      %391 = vmatpush.msra.mxu0 %v271
      %392 = vmatpush.msra.mxu0 %v270
      %393 = vmatpush.msra.mxu0 %v269
      %394 = vmatpush.msra.mxu0 %v268
      %395 = vmatpush.msra.mxu0 %v267
      %396 = vmatpush.msra.mxu0 %v266
      %397 = vmatpush.msra.mxu0 %v265
      %398 = vmatpush.msra.mxu0 %v264
      %399 = vmatpush.msra.mxu0 %v263
      %400 = vmatpush.msra.mxu0 %v262
      %401 = vmatpush.msra.mxu0 %v261
      %402 = vmatpush.msra.mxu0 %v260
      %403 = vmatpush.msra.mxu0 %v259
      %404 = vmatpush.msra.mxu0 %v258
      %405 = vmatpush.msra.mxu0 %v257
      %406 = vmatmul.f32.gmra.mxu0 %v178
      %v407 = vpop.f32.mrf.mxu0
      %v408 = vadd.f32 %v295, %v407
      %409 = vmatmul.f32.gmra.mxu0 %v180
      %v410 = vpop.f32.mrf.mxu0
      %v411 = vadd.f32 %v298, %v410
      %412 = vmatmul.f32.gmra.mxu0 %v182
      %v413 = vpop.f32.mrf.mxu0
      %v414 = vadd.f32 %v301, %v413
      %415 = vmatmul.f32.gmra.mxu0 %v184
      %v416 = vpop.f32.mrf.mxu0
      %v417 = vadd.f32 %v304, %v416
      %418 = vmatmul.f32.gmra.mxu0 %v186
      %v419 = vpop.f32.mrf.mxu0
      %v420 = vadd.f32 %v307, %v419
      %421 = vmatmul.f32.gmra.mxu0 %v188
      %v422 = vpop.f32.mrf.mxu0
      %v423 = vadd.f32 %v310, %v422
      %424 = vmatmul.f32.gmra.mxu0 %v190
      %v425 = vpop.f32.mrf.mxu0
      %v426 = vadd.f32 %v313, %v425
      %427 = vmatmul.f32.gmra.mxu0 %v192
      %v428 = vpop.f32.mrf.mxu0
      %v429 = vadd.f32 %v316, %v428
      %430 = vmatmul.f32.gmra.mxu0 %v194
      %v431 = vpop.f32.mrf.mxu0
      %v432 = vadd.f32 %v319, %v431
      %433 = vmatmul.f32.gmra.mxu0 %v196
      %v434 = vpop.f32.mrf.mxu0
      %v435 = vadd.f32 %v322, %v434
      %436 = vmatmul.f32.gmra.mxu0 %v198
      %v437 = vpop.f32.mrf.mxu0
      %v438 = vadd.f32 %v325, %v437
      %439 = vmatmul.f32.gmra.mxu0 %v200
      %v440 = vpop.f32.mrf.mxu0
      %v441 = vadd.f32 %v328, %v440
      %442 = vmatmul.f32.gmra.mxu0 %v202
      %v443 = vpop.f32.mrf.mxu0
      %v444 = vadd.f32 %v331, %v443
      %445 = vmatmul.f32.gmra.mxu0 %v204
      %v446 = vpop.f32.mrf.mxu0
      %v447 = vadd.f32 %v334, %v446
      %448 = vmatmul.f32.gmra.mxu0 %v206
      %v449 = vpop.f32.mrf.mxu0
      %v450 = vadd.f32 %v337, %v449
      %451 = vmatmul.f32.gmra.mxu0 %v208
      %v452 = vpop.f32.mrf.mxu0
      %v453 = vadd.f32 %v340, %v452
      %454 = vmatmul.f32.gmra.mxu0 %v210
      %v455 = vpop.f32.mrf.mxu0
      %v456 = vadd.f32 %v343, %v455
      %457 = vmatmul.f32.gmra.mxu0 %v212
      %v458 = vpop.f32.mrf.mxu0
      %v459 = vadd.f32 %v346, %v458
      %460 = vmatmul.f32.gmra.mxu0 %v214
      %v461 = vpop.f32.mrf.mxu0
      %v462 = vadd.f32 %v349, %v461
      %463 = vmatmul.f32.gmra.mxu0 %v216
      %v464 = vpop.f32.mrf.mxu0
      %v465 = vadd.f32 %v352, %v464
      %466 = vmatmul.f32.gmra.mxu0 %v218
      %v467 = vpop.f32.mrf.mxu0
      %v468 = vadd.f32 %v355, %v467
      %469 = vmatmul.f32.gmra.mxu0 %v220
      %v470 = vpop.f32.mrf.mxu0
      %v471 = vadd.f32 %v358, %v470
      %472 = vmatmul.f32.gmra.mxu0 %v222
      %v473 = vpop.f32.mrf.mxu0
      %v474 = vadd.f32 %v361, %v473
      %475 = vmatmul.f32.gmra.mxu0 %v224
      %v476 = vpop.f32.mrf.mxu0
      %v477 = vadd.f32 %v364, %v476
      %478 = vmatmul.f32.gmra.mxu0 %v226
      %v479 = vpop.f32.mrf.mxu0
      %v480 = vadd.f32 %v367, %v479
      %481 = vmatmul.f32.gmra.mxu0 %v228
      %v482 = vpop.f32.mrf.mxu0
      %v483 = vadd.f32 %v370, %v482
      %484 = vmatmul.f32.gmra.mxu0 %v230
      %v485 = vpop.f32.mrf.mxu0
      %v486 = vadd.f32 %v373, %v485
      %487 = vmatmul.f32.gmra.mxu0 %v232
      %v488 = vpop.f32.mrf.mxu0
      %v489 = vadd.f32 %v376, %v488
      %490 = vmatmul.f32.gmra.mxu0 %v234
      %v491 = vpop.f32.mrf.mxu0
      %v492 = vadd.f32 %v379, %v491
      %493 = vmatmul.f32.gmra.mxu0 %v236
      %v494 = vpop.f32.mrf.mxu0
      %v495 = vadd.f32 %v382, %v494
      %496 = vmatmul.f32.gmra.mxu0 %v238
      %v497 = vpop.f32.mrf.mxu0
      %v498 = vadd.f32 %v385, %v497
      %499 = vmatmul.f32.gmra.mxu0 %v240
      %v500 = vpop.f32.mrf.mxu0
      %v501 = vadd.f32 %v388, %v500
      %502 = vdwg.mxu0
      %v503 = vmax.f32 %v408, 0.0
      %v504 = vmax.f32 %v411, 0.0
      %v505 = vmax.f32 %v414, 0.0
      %v506 = vmax.f32 %v417, 0.0
      %v507 = vmax.f32 %v420, 0.0
      %v508 = vmax.f32 %v423, 0.0
      %v509 = vmax.f32 %v426, 0.0
      %v510 = vmax.f32 %v429, 0.0
      %v511 = vmax.f32 %v432, 0.0
      %v512 = vmax.f32 %v435, 0.0
      %v513 = vmax.f32 %v438, 0.0
      %v514 = vmax.f32 %v441, 0.0
      %v515 = vmax.f32 %v444, 0.0
      %v516 = vmax.f32 %v447, 0.0
      %v517 = vmax.f32 %v450, 0.0
      %v518 = vmax.f32 %v453, 0.0
      %v519 = vmax.f32 %v456, 0.0
      %v520 = vmax.f32 %v459, 0.0
      %v521 = vmax.f32 %v462, 0.0
      %v522 = vmax.f32 %v465, 0.0
      %v523 = vmax.f32 %v468, 0.0
      %v524 = vmax.f32 %v471, 0.0
      %v525 = vmax.f32 %v474, 0.0
      %v526 = vmax.f32 %v477, 0.0
      %v527 = vmax.f32 %v480, 0.0
      %v528 = vmax.f32 %v483, 0.0
      %v529 = vmax.f32 %v486, 0.0
      %v530 = vmax.f32 %v489, 0.0
      %v531 = vmax.f32 %v492, 0.0
      %v532 = vmax.f32 %v495, 0.0
      %v533 = vmax.f32 %v498, 0.0
      %v534 = vmax.f32 %v501, 0.0
      %vm535 = vcmask 261120
      %536 = vst.msk [vmem:[%s175] sm:$0xff] %vm535, %v503
      %537 = vst.msk [vmem:[%s175 + $0x8] sm:$0xff] %vm535, %v504
      %538 = vst.msk [vmem:[%s175 + $0x10] sm:$0xff] %vm535, %v505
      %539 = vst.msk [vmem:[%s175 + $0x18] sm:$0xff] %vm535, %v506
      %540 = vst.msk [vmem:[%s175 + $0x20] sm:$0xff] %vm535, %v507
      %541 = vst.msk [vmem:[%s175 + $0x28] sm:$0xff] %vm535, %v508
      %542 = vst.msk [vmem:[%s175 + $0x30] sm:$0xff] %vm535, %v509
      %543 = vst.msk [vmem:[%s175 + $0x38] sm:$0xff] %vm535, %v510
      %544 = vst.msk [vmem:[%s175 + $0x40] sm:$0xff] %vm535, %v511
      %545 = vst.msk [vmem:[%s175 + $0x48] sm:$0xff] %vm535, %v512
      %546 = vst.msk [vmem:[%s175 + $0x50] sm:$0xff] %vm535, %v513
      %547 = vst.msk [vmem:[%s175 + $0x58] sm:$0xff] %vm535, %v514
      %548 = vst.msk [vmem:[%s175 + $0x60] sm:$0xff] %vm535, %v515
      %549 = vst.msk [vmem:[%s175 + $0x68] sm:$0xff] %vm535, %v516
      %550 = vst.msk [vmem:[%s175 + $0x70] sm:$0xff] %vm535, %v517
      %551 = vst.msk [vmem:[%s175 + $0x78] sm:$0xff] %vm535, %v518
      %552 = vst.msk [vmem:[%s175 + $0x80] sm:$0xff] %vm535, %v519
      %553 = vst.msk [vmem:[%s175 + $0x88] sm:$0xff] %vm535, %v520
      %554 = vst.msk [vmem:[%s175 + $0x90] sm:$0xff] %vm535, %v521
      %555 = vst.msk [vmem:[%s175 + $0x98] sm:$0xff] %vm535, %v522
      %556 = vst.msk [vmem:[%s175 + $0xa0] sm:$0xff] %vm535, %v523
      %557 = vst.msk [vmem:[%s175 + $0xa8] sm:$0xff] %vm535, %v524
      %558 = vst.msk [vmem:[%s175 + $0xb0] sm:$0xff] %vm535, %v525
      %559 = vst.msk [vmem:[%s175 + $0xb8] sm:$0xff] %vm535, %v526
      %560 = vst.msk [vmem:[%s175 + $0xc0] sm:$0xff] %vm535, %v527
      %561 = vst.msk [vmem:[%s175 + $0xc8] sm:$0xff] %vm535, %v528
      %562 = vst.msk [vmem:[%s175 + $0xd0] sm:$0xff] %vm535, %v529
      %563 = vst.msk [vmem:[%s175 + $0xd8] sm:$0xff] %vm535, %v530
      %564 = vst.msk [vmem:[%s175 + $0xe0] sm:$0xff] %vm535, %v531
      %565 = vst.msk [vmem:[%s175 + $0xe8] sm:$0xff] %vm535, %v532
      %566 = vst.msk [vmem:[%s175 + $0xf0] sm:$0xff] %vm535, %v533
      %567 = vst.msk [vmem:[%s175 + $0xf8] sm:$0xff] %vm535, %v534
      %s568 = smul.u32 32, %s14
      %p569 = scmp.lt.s32.totalorder %s568, 127
      %s570 = scalar_select %p569, %s568, 127
      %s571 = smul.addr %s570, 8
      %s572 = scalar_lea.vmem %s3, %s571
      // Predicated region
      $region33: #{cnn_block_forward.4} parent=31 // pred_check
        %p573 = pneg %p100
      $region34: #{cnn_block_forward.4} parent=31 // pred_check_branch
        %575 = sbr.rel (%p573) target = $region36
      $region35: #{cnn_block_forward.4} parent=31 // pred_region
        %s576 = smul.u32 32, %s14
      $region36: #{cnn_block_forward.4} parent=31 // pred_fallthru
        _
    $region32: #{cnn_block_forward.4} parent=5 // pred_fallthru
      _
    %p577 = scmp.le.s32.totalorder 2, %s9
    // Predicated region
    $region37: #{cnn_block_forward.4} parent=5 // pred_check
      %p578 = pneg %p577
    $region38: #{cnn_block_forward.4} parent=5 // pred_check_branch
      %580 = sbr.rel (%p578) target = $region40
    $region39: #{cnn_block_forward.4} parent=5 // pred_region
      %s581 = ssub.s32 %s9, 2
      // Predicated region
      $region41: #{cnn_block_forward.4} parent=39 // pred_check
        %p582 = pneg %p106
      $region42: #{cnn_block_forward.4} parent=39 // pred_check_branch
        %584 = sbr.rel (%p582) target = $region44
      $region43: #{cnn_block_forward.4} parent=39 // pred_region
        %s585 = smul.u32 32, %s15
        %p586 = scmp.lt.s32.totalorder %s585, 127
        %s587 = scalar_select %p586, %s585, 127
        %s588 = smul.addr %s587, 8
        %s589 = scalar_lea.vmem %s3, %s588
      $region44: #{cnn_block_forward.4} parent=39 // pred_fallthru
        _
    $region40: #{cnn_block_forward.4} parent=5 // pred_fallthru
      _
  $region6: #{cnn_block_forward.4} parent=0 // loop_footer
    %s13 = sadd.s32 1, %s9
  $region7: #{cnn_block_forward.4} parent=0 // loop_footer_branch
    %8 = sbr.rel target = $region3
  $region8: #{cnn_block_forward.4} parent=0 // loop_exit
    _

// kernel: cnn_block_forward.5
$region0: #{cnn_block_forward.5}
  #allocation0 [shape = 'u32[]', space=smem, size = 0x4, offset = 0x4, fixed_abs, tag = 'smem constant byte address 0x4 - core index']
  #allocation1 [shape = 'u32[72,128]{1,0:T(1,128)}', space=vmem, size = 0x9000, scoped, tag = 'internal scratch']
  %s0 = inlined_call_operand.vmem [shape: f32[168,512], index: 0, kind: input, shape index: {}]
  %s1 = inlined_call_operand.vmem [shape: f32[512,64], index: 1, kind: input, shape index: {}]
  %s2 = inlined_call_operand.vmem [shape: f32[1,64], index: 2, kind: input, shape index: {}]
  %s3 = inlined_call_operand.vmem [shape: f32[168,64], index: 3, kind: output, shape index: {}]
  %s4 = sld [smem:[#allocation0]]
  $region22: #{cnn_block_forward.5} parent=0
    _
  %s6 = ssub.s32 1, %s4
  %s7 = scalar_select 0, %s6, %s4
  // Predicated region
  $region2: #{cnn_block_forward.5} parent=0 // pred_check
    _
  $region3: #{cnn_block_forward.5} parent=0 // pred_check_branch
    %9 = sbr.rel (0) target = $region5
  $region4: #{cnn_block_forward.5} parent=0 // pred_region
    _
  $region5: #{cnn_block_forward.5} parent=0 // pred_fallthru
    _
  // Predicated region
  $region6: #{cnn_block_forward.5} parent=0 // pred_check
    _
  $region7: #{cnn_block_forward.5} parent=0 // pred_check_branch
    %11 = sbr.rel (0) target = $region9
  $region8: #{cnn_block_forward.5} parent=0 // pred_region
    _
  $region9: #{cnn_block_forward.5} parent=0 // pred_fallthru
    _
  // Predicated region
  $region10: #{cnn_block_forward.5} parent=0 // pred_check
    _
  $region11: #{cnn_block_forward.5} parent=0 // pred_check_branch
    %13 = sbr.rel (0) target = $region13
  $region12: #{cnn_block_forward.5} parent=0 // pred_region
    _
  $region13: #{cnn_block_forward.5} parent=0 // pred_fallthru
    _
  %v14 = vld [vmem:[%s0] sm:$0xff]
  %v15 = vld [vmem:[%s0 + $0x8] sm:$0xff]
  %v16 = vld [vmem:[%s0 + $0x10] sm:$0xff]
  %v17 = vld [vmem:[%s0 + $0x18] sm:$0xff]
  %v18 = vld [vmem:[%s0 + $0x20] sm:$0xff]
  %v19 = vld [vmem:[%s0 + $0x28] sm:$0xff]
  %v20 = vld [vmem:[%s0 + $0x30] sm:$0xff]
  %v21 = vld [vmem:[%s0 + $0x38] sm:$0xff]
  %v22 = vld [vmem:[%s0 + $0x40] sm:$0xff]
  %v23 = vld [vmem:[%s0 + $0x48] sm:$0xff]
  %v24 = vld [vmem:[%s0 + $0x50] sm:$0xff]
  %v25 = vld [vmem:[%s0 + $0x58] sm:$0xff]
  %v26 = vld [vmem:[%s0 + $0x60] sm:$0xff]
  %v27 = vld [vmem:[%s0 + $0x68] sm:$0xff]
  %v28 = vld [vmem:[%s0 + $0x70] sm:$0xff]
  %v29 = vld [vmem:[%s0 + $0x78] sm:$0xff]
  %v30 = vld [vmem:[%s0 + $0x80] sm:$0xff]
  %v31 = vld [vmem:[%s0 + $0x88] sm:$0xff]
  %v32 = vld [vmem:[%s0 + $0x90] sm:$0xff]
  %v33 = vld [vmem:[%s0 + $0x98] sm:$0xff]
  %v34 = vld [vmem:[%s0 + $0xa0] sm:$0xff]
  %v35 = vld [vmem:[%s0 + $0xa8] sm:$0xff]
  %v36 = vld [vmem:[%s0 + $0xb0] sm:$0xff]
  %v37 = vld [vmem:[%s0 + $0xb8] sm:$0xff]
  %v38 = vld [vmem:[%s0 + $0xc0] sm:$0xff]
  %v39 = vld [vmem:[%s0 + $0xc8] sm:$0xff]
  %v40 = vld [vmem:[%s0 + $0xd0] sm:$0xff]
  %v41 = vld [vmem:[%s0 + $0xd8] sm:$0xff]
  %v42 = vld [vmem:[%s0 + $0xe0] sm:$0xff]
  %v43 = vld [vmem:[%s0 + $0xe8] sm:$0xff]
  %v44 = vld [vmem:[%s0 + $0xf0] sm:$0xff]
  %v45 = vld [vmem:[%s0 + $0xf8] sm:$0xff]
  %v46 = vld [vmem:[%s0 + $0x100] sm:$0xff]
  %v47 = vld [vmem:[%s0 + $0x108] sm:$0xff]
  %v48 = vld [vmem:[%s0 + $0x110] sm:$0xff]
  %v49 = vld [vmem:[%s0 + $0x118] sm:$0xff]
  %v50 = vld [vmem:[%s0 + $0x120] sm:$0xff]
  %v51 = vld [vmem:[%s0 + $0x128] sm:$0xff]
  %v52 = vld [vmem:[%s0 + $0x130] sm:$0xff]
  %v53 = vld [vmem:[%s0 + $0x138] sm:$0xff]
  %v54 = vld [vmem:[%s0 + $0x140] sm:$0xff]
  %v55 = vld [vmem:[%s0 + $0x148] sm:$0xff]
  %v56 = vld [vmem:[%s0 + $0x150] sm:$0xff]
  %v57 = vld [vmem:[%s0 + $0x158] sm:$0xff]
  %v58 = vld [vmem:[%s0 + $0x160] sm:$0xff]
  %v59 = vld [vmem:[%s0 + $0x168] sm:$0xff]
  %v60 = vld [vmem:[%s0 + $0x170] sm:$0xff]
  %v61 = vld [vmem:[%s0 + $0x178] sm:$0xff]
  %v62 = vld [vmem:[%s0 + $0x180] sm:$0xff]
  %v63 = vld [vmem:[%s0 + $0x188] sm:$0xff]
  %v64 = vld [vmem:[%s0 + $0x190] sm:$0xff]
  %v65 = vld [vmem:[%s0 + $0x198] sm:$0xff]
  %v66 = vld [vmem:[%s0 + $0x1a0] sm:$0xff]
  %v67 = vld [vmem:[%s0 + $0x1a8] sm:$0xff]
  %v68 = vld [vmem:[%s0 + $0x1b0] sm:$0xff]
  %v69 = vld [vmem:[%s0 + $0x1b8] sm:$0xff]
  %v70 = vld [vmem:[%s0 + $0x1c0] sm:$0xff]
  %v71 = vld [vmem:[%s0 + $0x1c8] sm:$0xff]
  %v72 = vld [vmem:[%s0 + $0x1d0] sm:$0xff]
  %v73 = vld [vmem:[%s0 + $0x1d8] sm:$0xff]
  %v74 = vld [vmem:[%s0 + $0x1e0] sm:$0xff]
  %v75 = vld [vmem:[%s0 + $0x1e8] sm:$0xff]
  %v76 = vld [vmem:[%s0 + $0x1f0] sm:$0xff]
  %v77 = vld [vmem:[%s0 + $0x1f8] sm:$0xff]
  %v78 = vld [vmem:[%s0 + $0x200] sm:$0xff]
  %v79 = vld [vmem:[%s0 + $0x208] sm:$0xff]
  %v80 = vld [vmem:[%s0 + $0x210] sm:$0xff]
  %v81 = vld [vmem:[%s0 + $0x218] sm:$0xff]
  %v82 = vld [vmem:[%s0 + $0x220] sm:$0xff]
  %v83 = vld [vmem:[%s0 + $0x228] sm:$0xff]
  %v84 = vld [vmem:[%s0 + $0x230] sm:$0xff]
  %v85 = vld [vmem:[%s0 + $0x238] sm:$0xff]
  %v86 = vld [vmem:[%s0 + $0x240] sm:$0xff]
  %v87 = vld [vmem:[%s0 + $0x248] sm:$0xff]
  %v88 = vld [vmem:[%s0 + $0x250] sm:$0xff]
  %v89 = vld [vmem:[%s0 + $0x258] sm:$0xff]
  %v90 = vld [vmem:[%s0 + $0x260] sm:$0xff]
  %v91 = vld [vmem:[%s0 + $0x268] sm:$0xff]
  %v92 = vld [vmem:[%s0 + $0x270] sm:$0xff]
  %v93 = vld [vmem:[%s0 + $0x278] sm:$0xff]
  %v94 = vld [vmem:[%s0 + $0x280] sm:$0xff]
  %v95 = vld [vmem:[%s0 + $0x288] sm:$0xff]
  %v96 = vld [vmem:[%s0 + $0x290] sm:$0xff]
  %v97 = vld [vmem:[%s0 + $0x298] sm:$0xff]
  %v98 = vld [vmem:[%s1] sm:$0xff]
  %v99 = vld [vmem:[%s1 + $0x8] sm:$0xff]
  %v100 = vld [vmem:[%s1 + $0x10] sm:$0xff]
  %v101 = vld [vmem:[%s1 + $0x18] sm:$0xff]
  %v102 = vld [vmem:[%s1 + $0x20] sm:$0xff]
  %v103 = vld [vmem:[%s1 + $0x28] sm:$0xff]
  %v104 = vld [vmem:[%s1 + $0x30] sm:$0xff]
  %v105 = vld [vmem:[%s1 + $0x38] sm:$0xff]
  %v106 = vld [vmem:[%s1 + $0x40] sm:$0xff]
  %v107 = vld [vmem:[%s1 + $0x48] sm:$0xff]
  %v108 = vld [vmem:[%s1 + $0x50] sm:$0xff]
  %v109 = vld [vmem:[%s1 + $0x58] sm:$0xff]
  %v110 = vld [vmem:[%s1 + $0x60] sm:$0xff]
  %v111 = vld [vmem:[%s1 + $0x68] sm:$0xff]
  %v112 = vld [vmem:[%s1 + $0x70] sm:$0xff]
  %v113 = vld [vmem:[%s1 + $0x78] sm:$0xff]
  %v114 = vld [vmem:[%s1 + $0x80] sm:$0xff]
  %v115 = vld [vmem:[%s1 + $0x88] sm:$0xff]
  %v116 = vld [vmem:[%s1 + $0x90] sm:$0xff]
  %v117 = vld [vmem:[%s1 + $0x98] sm:$0xff]
  %v118 = vld [vmem:[%s1 + $0xa0] sm:$0xff]
  %v119 = vld [vmem:[%s1 + $0xa8] sm:$0xff]
  %v120 = vld [vmem:[%s1 + $0xb0] sm:$0xff]
  %v121 = vld [vmem:[%s1 + $0xb8] sm:$0xff]
  %v122 = vld [vmem:[%s1 + $0xc0] sm:$0xff]
  %v123 = vld [vmem:[%s1 + $0xc8] sm:$0xff]
  %v124 = vld [vmem:[%s1 + $0xd0] sm:$0xff]
  %v125 = vld [vmem:[%s1 + $0xd8] sm:$0xff]
  %v126 = vld [vmem:[%s1 + $0xe0] sm:$0xff]
  %v127 = vld [vmem:[%s1 + $0xe8] sm:$0xff]
  %v128 = vld [vmem:[%s1 + $0xf0] sm:$0xff]
  %v129 = vld [vmem:[%s1 + $0xf8] sm:$0xff]
  %v130 = vld [vmem:[%s1 + $0x100] sm:$0xff]
  %v131 = vld [vmem:[%s1 + $0x108] sm:$0xff]
  %v132 = vld [vmem:[%s1 + $0x110] sm:$0xff]
  %v133 = vld [vmem:[%s1 + $0x118] sm:$0xff]
  %v134 = vld [vmem:[%s1 + $0x120] sm:$0xff]
  %v135 = vld [vmem:[%s1 + $0x128] sm:$0xff]
  %v136 = vld [vmem:[%s1 + $0x130] sm:$0xff]
  %v137 = vld [vmem:[%s1 + $0x138] sm:$0xff]
  %v138 = vld [vmem:[%s1 + $0x140] sm:$0xff]
  %v139 = vld [vmem:[%s1 + $0x148] sm:$0xff]
  %v140 = vld [vmem:[%s1 + $0x150] sm:$0xff]
  %v141 = vld [vmem:[%s1 + $0x158] sm:$0xff]
  %v142 = vld [vmem:[%s1 + $0x160] sm:$0xff]
  %v143 = vld [vmem:[%s1 + $0x168] sm:$0xff]
  %v144 = vld [vmem:[%s1 + $0x170] sm:$0xff]
  %v145 = vld [vmem:[%s1 + $0x178] sm:$0xff]
  %v146 = vld [vmem:[%s1 + $0x180] sm:$0xff]
  %v147 = vld [vmem:[%s1 + $0x188] sm:$0xff]
  %v148 = vld [vmem:[%s1 + $0x190] sm:$0xff]
  %v149 = vld [vmem:[%s1 + $0x198] sm:$0xff]
  %v150 = vld [vmem:[%s1 + $0x1a0] sm:$0xff]
  %v151 = vld [vmem:[%s1 + $0x1a8] sm:$0xff]
  %v152 = vld [vmem:[%s1 + $0x1b0] sm:$0xff]
  %v153 = vld [vmem:[%s1 + $0x1b8] sm:$0xff]
  %v154 = vld [vmem:[%s1 + $0x1c0] sm:$0xff]
  %v155 = vld [vmem:[%s1 + $0x1c8] sm:$0xff]
  %v156 = vld [vmem:[%s1 + $0x1d0] sm:$0xff]
  %v157 = vld [vmem:[%s1 + $0x1d8] sm:$0xff]
  %v158 = vld [vmem:[%s1 + $0x1e0] sm:$0xff]
  %v159 = vld [vmem:[%s1 + $0x1e8] sm:$0xff]
  %v160 = vld [vmem:[%s1 + $0x1f0] sm:$0xff]
  %v161 = vld [vmem:[%s1 + $0x1f8] sm:$0xff]
  %v162 = vld [vmem:[%s2] sm:$0x1]
  %v164 = vperm.slane %v162, 0
  %166 = vmatpush.msra.mxu0 %v113
  %167 = vmatpush.msra.mxu0 %v112
  %168 = vmatpush.msra.mxu0 %v111
  %169 = vmatpush.msra.mxu0 %v110
  %170 = vmatpush.msra.mxu0 %v109
  %171 = vmatpush.msra.mxu0 %v108
  %172 = vmatpush.msra.mxu0 %v107
  %173 = vmatpush.msra.mxu0 %v106
  %174 = vmatpush.msra.mxu0 %v105
  %175 = vmatpush.msra.mxu0 %v104
  %176 = vmatpush.msra.mxu0 %v103
  %177 = vmatpush.msra.mxu0 %v102
  %178 = vmatpush.msra.mxu0 %v101
  %179 = vmatpush.msra.mxu0 %v100
  %180 = vmatpush.msra.mxu0 %v99
  %181 = vmatpush.msra.mxu0 %v98
  %182 = vmatmul.f32.gmra.mxu0 %v14
  %v183 = vpop.f32.mrf.mxu0
  %v184 = vadd.f32 %v164, %v183
  %185 = vmatmul.f32.gmra.mxu0 %v18
  %v186 = vpop.f32.mrf.mxu0
  %v187 = vadd.f32 %v164, %v186
  %188 = vmatmul.f32.gmra.mxu0 %v22
  %v189 = vpop.f32.mrf.mxu0
  %v190 = vadd.f32 %v164, %v189
  %191 = vmatmul.f32.gmra.mxu0 %v26
  %v192 = vpop.f32.mrf.mxu0
  %v193 = vadd.f32 %v164, %v192
  %194 = vmatmul.f32.gmra.mxu0 %v30
  %v195 = vpop.f32.mrf.mxu0
  %v196 = vadd.f32 %v164, %v195
  %197 = vmatmul.f32.gmra.mxu0 %v34
  %v198 = vpop.f32.mrf.mxu0
  %v199 = vadd.f32 %v164, %v198
  %200 = vmatmul.f32.gmra.mxu0 %v38
  %v201 = vpop.f32.mrf.mxu0
  %v202 = vadd.f32 %v164, %v201
  %203 = vmatmul.f32.gmra.mxu0 %v42
  %v204 = vpop.f32.mrf.mxu0
  %v205 = vadd.f32 %v164, %v204
  %206 = vmatmul.f32.gmra.mxu0 %v46
  %v207 = vpop.f32.mrf.mxu0
  %v208 = vadd.f32 %v164, %v207
  %209 = vmatmul.f32.gmra.mxu0 %v50
  %v210 = vpop.f32.mrf.mxu0
  %v211 = vadd.f32 %v164, %v210
  %212 = vmatmul.f32.gmra.mxu0 %v54
  %v213 = vpop.f32.mrf.mxu0
  %v214 = vadd.f32 %v164, %v213
  %215 = vmatmul.f32.gmra.mxu0 %v58
  %v216 = vpop.f32.mrf.mxu0
  %v217 = vadd.f32 %v164, %v216
  %218 = vmatmul.f32.gmra.mxu0 %v62
  %v219 = vpop.f32.mrf.mxu0
  %v220 = vadd.f32 %v164, %v219
  %221 = vmatmul.f32.gmra.mxu0 %v66
  %v222 = vpop.f32.mrf.mxu0
  %v223 = vadd.f32 %v164, %v222
  %224 = vmatmul.f32.gmra.mxu0 %v70
  %v225 = vpop.f32.mrf.mxu0
  %v226 = vadd.f32 %v164, %v225
  %227 = vmatmul.f32.gmra.mxu0 %v74
  %v228 = vpop.f32.mrf.mxu0
  %v229 = vadd.f32 %v164, %v228
  %230 = vmatmul.f32.gmra.mxu0 %v78
  %v231 = vpop.f32.mrf.mxu0
  %v232 = vadd.f32 %v164, %v231
  %233 = vmatmul.f32.gmra.mxu0 %v82
  %v234 = vpop.f32.mrf.mxu0
  %v235 = vadd.f32 %v164, %v234
  %236 = vmatmul.f32.gmra.mxu0 %v86
  %v237 = vpop.f32.mrf.mxu0
  %v238 = vadd.f32 %v164, %v237
  %239 = vmatmul.f32.gmra.mxu0 %v90
  %v240 = vpop.f32.mrf.mxu0
  %v241 = vadd.f32 %v164, %v240
  %242 = vmatmul.f32.gmra.mxu0 %v94
  %v243 = vpop.f32.mrf.mxu0
  %v244 = vadd.f32 %v164, %v243
  %245 = vdwg.mxu0
  %246 = vmatpush.msra.mxu0 %v129
  %247 = vmatpush.msra.mxu0 %v128
  %248 = vmatpush.msra.mxu0 %v127
  %249 = vmatpush.msra.mxu0 %v126
  %250 = vmatpush.msra.mxu0 %v125
  %251 = vmatpush.msra.mxu0 %v124
  %252 = vmatpush.msra.mxu0 %v123
  %253 = vmatpush.msra.mxu0 %v122
  %254 = vmatpush.msra.mxu0 %v121
  %255 = vmatpush.msra.mxu0 %v120
  %256 = vmatpush.msra.mxu0 %v119
  %257 = vmatpush.msra.mxu0 %v118
  %258 = vmatpush.msra.mxu0 %v117
  %259 = vmatpush.msra.mxu0 %v116
  %260 = vmatpush.msra.mxu0 %v115
  %261 = vmatpush.msra.mxu0 %v114
  %262 = vmatmul.f32.gmra.mxu0 %v15
  %v263 = vpop.f32.mrf.mxu0
  %v264 = vadd.f32 %v184, %v263
  %265 = vmatmul.f32.gmra.mxu0 %v19
  %v266 = vpop.f32.mrf.mxu0
  %v267 = vadd.f32 %v187, %v266
  %268 = vmatmul.f32.gmra.mxu0 %v23
  %v269 = vpop.f32.mrf.mxu0
  %v270 = vadd.f32 %v190, %v269
  %271 = vmatmul.f32.gmra.mxu0 %v27
  %v272 = vpop.f32.mrf.mxu0
  %v273 = vadd.f32 %v193, %v272
  %274 = vmatmul.f32.gmra.mxu0 %v31
  %v275 = vpop.f32.mrf.mxu0
  %v276 = vadd.f32 %v196, %v275
  %277 = vmatmul.f32.gmra.mxu0 %v35
  %v278 = vpop.f32.mrf.mxu0
  %v279 = vadd.f32 %v199, %v278
  %280 = vmatmul.f32.gmra.mxu0 %v39
  %v281 = vpop.f32.mrf.mxu0
  %v282 = vadd.f32 %v202, %v281
  %283 = vmatmul.f32.gmra.mxu0 %v43
  %v284 = vpop.f32.mrf.mxu0
  %v285 = vadd.f32 %v205, %v284
  %286 = vmatmul.f32.gmra.mxu0 %v47
  %v287 = vpop.f32.mrf.mxu0
  %v288 = vadd.f32 %v208, %v287
  %289 = vmatmul.f32.gmra.mxu0 %v51
  %v290 = vpop.f32.mrf.mxu0
  %v291 = vadd.f32 %v211, %v290
  %292 = vmatmul.f32.gmra.mxu0 %v55
  %v293 = vpop.f32.mrf.mxu0
  %v294 = vadd.f32 %v214, %v293
  %295 = vmatmul.f32.gmra.mxu0 %v59
  %v296 = vpop.f32.mrf.mxu0
  %v297 = vadd.f32 %v217, %v296
  %298 = vmatmul.f32.gmra.mxu0 %v63
  %v299 = vpop.f32.mrf.mxu0
  %v300 = vadd.f32 %v220, %v299
  %301 = vmatmul.f32.gmra.mxu0 %v67
  %v302 = vpop.f32.mrf.mxu0
  %v303 = vadd.f32 %v223, %v302
  %304 = vmatmul.f32.gmra.mxu0 %v71
  %v305 = vpop.f32.mrf.mxu0
  %v306 = vadd.f32 %v226, %v305
  %307 = vmatmul.f32.gmra.mxu0 %v75
  %v308 = vpop.f32.mrf.mxu0
  %v309 = vadd.f32 %v229, %v308
  %310 = vmatmul.f32.gmra.mxu0 %v79
  %v311 = vpop.f32.mrf.mxu0
  %v312 = vadd.f32 %v232, %v311
  %313 = vmatmul.f32.gmra.mxu0 %v83
  %v314 = vpop.f32.mrf.mxu0
  %v315 = vadd.f32 %v235, %v314
  %316 = vmatmul.f32.gmra.mxu0 %v87
  %v317 = vpop.f32.mrf.mxu0
  %v318 = vadd.f32 %v238, %v317
  %319 = vmatmul.f32.gmra.mxu0 %v91
  %v320 = vpop.f32.mrf.mxu0
  %v321 = vadd.f32 %v241, %v320
  %322 = vmatmul.f32.gmra.mxu0 %v95
  %v323 = vpop.f32.mrf.mxu0
  %v324 = vadd.f32 %v244, %v323
  %325 = vdwg.mxu0
  %326 = vmatpush.msra.mxu0 %v145
  %327 = vmatpush.msra.mxu0 %v144
  %328 = vmatpush.msra.mxu0 %v143
  %329 = vmatpush.msra.mxu0 %v142
  %330 = vmatpush.msra.mxu0 %v141
  %331 = vmatpush.msra.mxu0 %v140
  %332 = vmatpush.msra.mxu0 %v139
  %333 = vmatpush.msra.mxu0 %v138
  %334 = vmatpush.msra.mxu0 %v137
  %335 = vmatpush.msra.mxu0 %v136
  %336 = vmatpush.msra.mxu0 %v135
  %337 = vmatpush.msra.mxu0 %v134
  %338 = vmatpush.msra.mxu0 %v133
  %339 = vmatpush.msra.mxu0 %v132
  %340 = vmatpush.msra.mxu0 %v131
  %341 = vmatpush.msra.mxu0 %v130
  %342 = vmatmul.f32.gmra.mxu0 %v16
  %v343 = vpop.f32.mrf.mxu0
  %v344 = vadd.f32 %v264, %v343
  %345 = vmatmul.f32.gmra.mxu0 %v20
  %v346 = vpop.f32.mrf.mxu0
  %v347 = vadd.f32 %v267, %v346
  %348 = vmatmul.f32.gmra.mxu0 %v24
  %v349 = vpop.f32.mrf.mxu0
  %v350 = vadd.f32 %v270, %v349
  %351 = vmatmul.f32.gmra.mxu0 %v28
  %v352 = vpop.f32.mrf.mxu0
  %v353 = vadd.f32 %v273, %v352
  %354 = vmatmul.f32.gmra.mxu0 %v32
  %v355 = vpop.f32.mrf.mxu0
  %v356 = vadd.f32 %v276, %v355
  %357 = vmatmul.f32.gmra.mxu0 %v36
  %v358 = vpop.f32.mrf.mxu0
  %v359 = vadd.f32 %v279, %v358
  %360 = vmatmul.f32.gmra.mxu0 %v40
  %v361 = vpop.f32.mrf.mxu0
  %v362 = vadd.f32 %v282, %v361
  %363 = vmatmul.f32.gmra.mxu0 %v44
  %v364 = vpop.f32.mrf.mxu0
  %v365 = vadd.f32 %v285, %v364
  %366 = vmatmul.f32.gmra.mxu0 %v48
  %v367 = vpop.f32.mrf.mxu0
  %v368 = vadd.f32 %v288, %v367
  %369 = vmatmul.f32.gmra.mxu0 %v52
  %v370 = vpop.f32.mrf.mxu0
  %v371 = vadd.f32 %v291, %v370
  %372 = vmatmul.f32.gmra.mxu0 %v56
  %v373 = vpop.f32.mrf.mxu0
  %v374 = vadd.f32 %v294, %v373
  %375 = vmatmul.f32.gmra.mxu0 %v60
  %v376 = vpop.f32.mrf.mxu0
  %v377 = vadd.f32 %v297, %v376
  %378 = vmatmul.f32.gmra.mxu0 %v64
  %v379 = vpop.f32.mrf.mxu0
  %v380 = vadd.f32 %v300, %v379
  %381 = vmatmul.f32.gmra.mxu0 %v68
  %v382 = vpop.f32.mrf.mxu0
  %v383 = vadd.f32 %v303, %v382
  %384 = vmatmul.f32.gmra.mxu0 %v72
  %v385 = vpop.f32.mrf.mxu0
  %v386 = vadd.f32 %v306, %v385
  %387 = vmatmul.f32.gmra.mxu0 %v76
  %v388 = vpop.f32.mrf.mxu0
  %v389 = vadd.f32 %v309, %v388
  %390 = vmatmul.f32.gmra.mxu0 %v80
  %v391 = vpop.f32.mrf.mxu0
  %v392 = vadd.f32 %v312, %v391
  %393 = vmatmul.f32.gmra.mxu0 %v84
  %v394 = vpop.f32.mrf.mxu0
  %v395 = vadd.f32 %v315, %v394
  %396 = vmatmul.f32.gmra.mxu0 %v88
  %v397 = vpop.f32.mrf.mxu0
  %v398 = vadd.f32 %v318, %v397
  %399 = vmatmul.f32.gmra.mxu0 %v92
  %v400 = vpop.f32.mrf.mxu0
  %v401 = vadd.f32 %v321, %v400
  %402 = vmatmul.f32.gmra.mxu0 %v96
  %v403 = vpop.f32.mrf.mxu0
  %v404 = vadd.f32 %v324, %v403
  %405 = vdwg.mxu0
  %406 = vmatpush.msra.mxu0 %v161
  %407 = vmatpush.msra.mxu0 %v160
  %408 = vmatpush.msra.mxu0 %v159
  %409 = vmatpush.msra.mxu0 %v158
  %410 = vmatpush.msra.mxu0 %v157
  %411 = vmatpush.msra.mxu0 %v156
  %412 = vmatpush.msra.mxu0 %v155
  %413 = vmatpush.msra.mxu0 %v154
  %414 = vmatpush.msra.mxu0 %v153
  %415 = vmatpush.msra.mxu0 %v152
  %416 = vmatpush.msra.mxu0 %v151
  %417 = vmatpush.msra.mxu0 %v150
  %418 = vmatpush.msra.mxu0 %v149
  %419 = vmatpush.msra.mxu0 %v148
  %420 = vmatpush.msra.mxu0 %v147
  %421 = vmatpush.msra.mxu0 %v146
  %422 = vmatmul.f32.gmra.mxu0 %v17
  %v423 = vpop.f32.mrf.mxu0
  %v424 = vadd.f32 %v344, %v423
  %425 = vmatmul.f32.gmra.mxu0 %v21
  %v426 = vpop.f32.mrf.mxu0
  %v427 = vadd.f32 %v347, %v426
  %428 = vmatmul.f32.gmra.mxu0 %v25
  %v429 = vpop.f32.mrf.mxu0
  %v430 = vadd.f32 %v350, %v429
  %431 = vmatmul.f32.gmra.mxu0 %v29
  %v432 = vpop.f32.mrf.mxu0
  %v433 = vadd.f32 %v353, %v432
  %434 = vmatmul.f32.gmra.mxu0 %v33
  %v435 = vpop.f32.mrf.mxu0
  %v436 = vadd.f32 %v356, %v435
  %437 = vmatmul.f32.gmra.mxu0 %v37
  %v438 = vpop.f32.mrf.mxu0
  %v439 = vadd.f32 %v359, %v438
  %440 = vmatmul.f32.gmra.mxu0 %v41
  %v441 = vpop.f32.mrf.mxu0
  %v442 = vadd.f32 %v362, %v441
  %443 = vmatmul.f32.gmra.mxu0 %v45
  %v444 = vpop.f32.mrf.mxu0
  %v445 = vadd.f32 %v365, %v444
  %446 = vmatmul.f32.gmra.mxu0 %v49
  %v447 = vpop.f32.mrf.mxu0
  %v448 = vadd.f32 %v368, %v447
  %449 = vmatmul.f32.gmra.mxu0 %v53
  %v450 = vpop.f32.mrf.mxu0
  %v451 = vadd.f32 %v371, %v450
  %452 = vmatmul.f32.gmra.mxu0 %v57
  %v453 = vpop.f32.mrf.mxu0
  %v454 = vadd.f32 %v374, %v453
  %455 = vmatmul.f32.gmra.mxu0 %v61
  %v456 = vpop.f32.mrf.mxu0
  %v457 = vadd.f32 %v377, %v456
  %458 = vmatmul.f32.gmra.mxu0 %v65
  %v459 = vpop.f32.mrf.mxu0
  %v460 = vadd.f32 %v380, %v459
  %461 = vmatmul.f32.gmra.mxu0 %v69
  %v462 = vpop.f32.mrf.mxu0
  %v463 = vadd.f32 %v383, %v462
  %464 = vmatmul.f32.gmra.mxu0 %v73
  %v465 = vpop.f32.mrf.mxu0
  %v466 = vadd.f32 %v386, %v465
  %467 = vmatmul.f32.gmra.mxu0 %v77
  %v468 = vpop.f32.mrf.mxu0
  %v469 = vadd.f32 %v389, %v468
  %470 = vmatmul.f32.gmra.mxu0 %v81
  %v471 = vpop.f32.mrf.mxu0
  %v472 = vadd.f32 %v392, %v471
  %473 = vmatmul.f32.gmra.mxu0 %v85
  %v474 = vpop.f32.mrf.mxu0
  %v475 = vadd.f32 %v395, %v474
  %476 = vmatmul.f32.gmra.mxu0 %v89
  %v477 = vpop.f32.mrf.mxu0
  %v478 = vadd.f32 %v398, %v477
  %479 = vmatmul.f32.gmra.mxu0 %v93
  %v480 = vpop.f32.mrf.mxu0
  %v481 = vadd.f32 %v401, %v480
  %482 = vmatmul.f32.gmra.mxu0 %v97
  %v483 = vpop.f32.mrf.mxu0
  %v484 = vadd.f32 %v404, %v483
  %485 = vdwg.mxu0
  %v486 = vmax.f32 %v424, 0.0
  %v487 = vmax.f32 %v427, 0.0
  %v488 = vmax.f32 %v430, 0.0
  %v489 = vmax.f32 %v433, 0.0
  %v490 = vmax.f32 %v436, 0.0
  %v491 = vmax.f32 %v439, 0.0
  %v492 = vmax.f32 %v442, 0.0
  %v493 = vmax.f32 %v445, 0.0
  %v494 = vmax.f32 %v448, 0.0
  %v495 = vmax.f32 %v451, 0.0
  %v496 = vmax.f32 %v454, 0.0
  %v497 = vmax.f32 %v457, 0.0
  %v498 = vmax.f32 %v460, 0.0
  %v499 = vmax.f32 %v463, 0.0
  %v500 = vmax.f32 %v466, 0.0
  %v501 = vmax.f32 %v469, 0.0
  %v502 = vmax.f32 %v472, 0.0
  %v503 = vmax.f32 %v475, 0.0
  %v504 = vmax.f32 %v478, 0.0
  %v505 = vmax.f32 %v481, 0.0
  %v506 = vmax.f32 %v484, 0.0
  %vm507 = vcmask 523264
  %508 = vst.msk [vmem:[%s3] sm:$0xff] %vm507, %v486
  %509 = vst.msk [vmem:[%s3 + $0x8] sm:$0xff] %vm507, %v487
  %510 = vst.msk [vmem:[%s3 + $0x10] sm:$0xff] %vm507, %v488
  %511 = vst.msk [vmem:[%s3 + $0x18] sm:$0xff] %vm507, %v489
  %512 = vst.msk [vmem:[%s3 + $0x20] sm:$0xff] %vm507, %v490
  %513 = vst.msk [vmem:[%s3 + $0x28] sm:$0xff] %vm507, %v491
  %514 = vst.msk [vmem:[%s3 + $0x30] sm:$0xff] %vm507, %v492
  %515 = vst.msk [vmem:[%s3 + $0x38] sm:$0xff] %vm507, %v493
  %516 = vst.msk [vmem:[%s3 + $0x40] sm:$0xff] %vm507, %v494
  %517 = vst.msk [vmem:[%s3 + $0x48] sm:$0xff] %vm507, %v495
  %518 = vst.msk [vmem:[%s3 + $0x50] sm:$0xff] %vm507, %v496
  %519 = vst.msk [vmem:[%s3 + $0x58] sm:$0xff] %vm507, %v497
  %520 = vst.msk [vmem:[%s3 + $0x60] sm:$0xff] %vm507, %v498
  %521 = vst.msk [vmem:[%s3 + $0x68] sm:$0xff] %vm507, %v499
  %522 = vst.msk [vmem:[%s3 + $0x70] sm:$0xff] %vm507, %v500
  %523 = vst.msk [vmem:[%s3 + $0x78] sm:$0xff] %vm507, %v501
  %524 = vst.msk [vmem:[%s3 + $0x80] sm:$0xff] %vm507, %v502
  %525 = vst.msk [vmem:[%s3 + $0x88] sm:$0xff] %vm507, %v503
  %526 = vst.msk [vmem:[%s3 + $0x90] sm:$0xff] %vm507, %v504
  %527 = vst.msk [vmem:[%s3 + $0x98] sm:$0xff] %vm507, %v505
  %528 = vst.msk [vmem:[%s3 + $0xa0] sm:$0xff] %vm507, %v506
  // Predicated region
  $region14: #{cnn_block_forward.5} parent=0 // pred_check
    _
  $region15: #{cnn_block_forward.5} parent=0 // pred_check_branch
    %530 = sbr.rel (0) target = $region17
  $region16: #{cnn_block_forward.5} parent=0 // pred_region
    _
  $region17: #{cnn_block_forward.5} parent=0 // pred_fallthru
    _
  // Predicated region
  $region18: #{cnn_block_forward.5} parent=0 // pred_check
    _
  $region19: #{cnn_block_forward.5} parent=0 // pred_check_branch
    %532 = sbr.rel (0) target = $region21
  $region20: #{cnn_block_forward.5} parent=0 // pred_region
    _
  $region21: #{cnn_block_forward.5} parent=0 // pred_fallthru
    _

// kernel: cnn_block_forward.6
$region0: #{cnn_block_forward.6}
  #allocation0 [shape = 'u32[]', space=smem, size = 0x4, offset = 0x4, fixed_abs, tag = 'smem constant byte address 0x4 - core index']
  #allocation1 [shape = 'u32[72,128]{1,0:T(1,128)}', space=vmem, size = 0x9000, scoped, tag = 'internal scratch']
  %s0 = inlined_call_operand.vmem [shape: f32[104,576], index: 0, kind: input, shape index: {}]
  %s1 = inlined_call_operand.vmem [shape: f32[576,32], index: 1, kind: input, shape index: {}]
  %s2 = inlined_call_operand.vmem [shape: f32[1,32], index: 2, kind: input, shape index: {}]
  %s3 = inlined_call_operand.vmem [shape: f32[104,32], index: 3, kind: output, shape index: {}]
  %s4 = sld [smem:[#allocation0]]
  $region22: #{cnn_block_forward.6} parent=0
    _
  %s6 = ssub.s32 1, %s4
  %s7 = scalar_select 0, %s6, %s4
  // Predicated region
  $region2: #{cnn_block_forward.6} parent=0 // pred_check
    _
  $region3: #{cnn_block_forward.6} parent=0 // pred_check_branch
    %9 = sbr.rel (0) target = $region5
  $region4: #{cnn_block_forward.6} parent=0 // pred_region
    _
  $region5: #{cnn_block_forward.6} parent=0 // pred_fallthru
    _
  // Predicated region
  $region6: #{cnn_block_forward.6} parent=0 // pred_check
    _
  $region7: #{cnn_block_forward.6} parent=0 // pred_check_branch
    %11 = sbr.rel (0) target = $region9
  $region8: #{cnn_block_forward.6} parent=0 // pred_region
    _
  $region9: #{cnn_block_forward.6} parent=0 // pred_fallthru
    _
  // Predicated region
  $region10: #{cnn_block_forward.6} parent=0 // pred_check
    _
  $region11: #{cnn_block_forward.6} parent=0 // pred_check_branch
    %13 = sbr.rel (0) target = $region13
  $region12: #{cnn_block_forward.6} parent=0 // pred_region
    _
  $region13: #{cnn_block_forward.6} parent=0 // pred_fallthru
    _
  %v14 = vld [vmem:[%s0] sm:$0xff]
  %v15 = vld [vmem:[%s0 + $0x8] sm:$0xff]
  %v16 = vld [vmem:[%s0 + $0x10] sm:$0xff]
  %v17 = vld [vmem:[%s0 + $0x18] sm:$0xff]
  %v18 = vld [vmem:[%s0 + $0x20] sm:$0xff]
  %v19 = vld [vmem:[%s0 + $0x28] sm:$0xff]
  %v20 = vld [vmem:[%s0 + $0x30] sm:$0xff]
  %v21 = vld [vmem:[%s0 + $0x38] sm:$0xff]
  %v22 = vld [vmem:[%s0 + $0x40] sm:$0xff]
  %v23 = vld [vmem:[%s0 + $0x48] sm:$0xff]
  %v24 = vld [vmem:[%s0 + $0x50] sm:$0xff]
  %v25 = vld [vmem:[%s0 + $0x58] sm:$0xff]
  %v26 = vld [vmem:[%s0 + $0x60] sm:$0xff]
  %v27 = vld [vmem:[%s0 + $0x68] sm:$0xff]
  %v28 = vld [vmem:[%s0 + $0x70] sm:$0xff]
  %v29 = vld [vmem:[%s0 + $0x78] sm:$0xff]
  %v30 = vld [vmem:[%s0 + $0x80] sm:$0xff]
  %v31 = vld [vmem:[%s0 + $0x88] sm:$0xff]
  %v32 = vld [vmem:[%s0 + $0x90] sm:$0xff]
  %v33 = vld [vmem:[%s0 + $0x98] sm:$0xff]
  %v34 = vld [vmem:[%s0 + $0xa0] sm:$0xff]
  %v35 = vld [vmem:[%s0 + $0xa8] sm:$0xff]
  %v36 = vld [vmem:[%s0 + $0xb0] sm:$0xff]
  %v37 = vld [vmem:[%s0 + $0xb8] sm:$0xff]
  %v38 = vld [vmem:[%s0 + $0xc0] sm:$0xff]
  %v39 = vld [vmem:[%s0 + $0xc8] sm:$0xff]
  %v40 = vld [vmem:[%s0 + $0xd0] sm:$0xff]
  %v41 = vld [vmem:[%s0 + $0xd8] sm:$0xff]
  %v42 = vld [vmem:[%s0 + $0xe0] sm:$0xff]
  %v43 = vld [vmem:[%s0 + $0xe8] sm:$0xff]
  %v44 = vld [vmem:[%s0 + $0xf0] sm:$0xff]
  %v45 = vld [vmem:[%s0 + $0xf8] sm:$0xff]
  %v46 = vld [vmem:[%s0 + $0x100] sm:$0xff]
  %v47 = vld [vmem:[%s0 + $0x108] sm:$0xff]
  %v48 = vld [vmem:[%s0 + $0x110] sm:$0xff]
  %v49 = vld [vmem:[%s0 + $0x118] sm:$0xff]
  %v50 = vld [vmem:[%s0 + $0x120] sm:$0xff]
  %v51 = vld [vmem:[%s0 + $0x128] sm:$0xff]
  %v52 = vld [vmem:[%s0 + $0x130] sm:$0xff]
  %v53 = vld [vmem:[%s0 + $0x138] sm:$0xff]
  %v54 = vld [vmem:[%s0 + $0x140] sm:$0xff]
  %v55 = vld [vmem:[%s0 + $0x148] sm:$0xff]
  %v56 = vld [vmem:[%s0 + $0x150] sm:$0xff]
  %v57 = vld [vmem:[%s0 + $0x158] sm:$0xff]
  %v58 = vld [vmem:[%s0 + $0x160] sm:$0xff]
  %v59 = vld [vmem:[%s0 + $0x168] sm:$0xff]
  %v60 = vld [vmem:[%s0 + $0x170] sm:$0xff]
  %v61 = vld [vmem:[%s0 + $0x178] sm:$0xff]
  %v62 = vld [vmem:[%s0 + $0x180] sm:$0xff]
  %v63 = vld [vmem:[%s0 + $0x188] sm:$0xff]
  %v64 = vld [vmem:[%s0 + $0x190] sm:$0xff]
  %v65 = vld [vmem:[%s0 + $0x198] sm:$0xff]
  %v66 = vld [vmem:[%s0 + $0x1a0] sm:$0xff]
  %v67 = vld [vmem:[%s0 + $0x1a8] sm:$0xff]
  %v68 = vld [vmem:[%s0 + $0x1b0] sm:$0xff]
  %v69 = vld [vmem:[%s0 + $0x1b8] sm:$0xff]
  %v70 = vld [vmem:[%s0 + $0x1c0] sm:$0xff]
  %v71 = vld [vmem:[%s0 + $0x1c8] sm:$0xff]
  %v72 = vld [vmem:[%s0 + $0x1d0] sm:$0xff]
  %v73 = vld [vmem:[%s0 + $0x1d8] sm:$0xff]
  %v74 = vld [vmem:[%s0 + $0x1e0] sm:$0xff]
  %v75 = vld [vmem:[%s0 + $0x1e8] sm:$0xff]
  %v76 = vld [vmem:[%s0 + $0x1f0] sm:$0xff]
  %v77 = vld [vmem:[%s0 + $0x1f8] sm:$0xff]
  %v78 = vld [vmem:[%s0 + $0x200] sm:$0xff]
  %v79 = vld [vmem:[%s1] sm:$0xff]
  %v80 = vld [vmem:[%s1 + $0x8] sm:$0xff]
  %v81 = vld [vmem:[%s1 + $0x10] sm:$0xff]
  %v82 = vld [vmem:[%s1 + $0x18] sm:$0xff]
  %v83 = vld [vmem:[%s1 + $0x20] sm:$0xff]
  %v84 = vld [vmem:[%s1 + $0x28] sm:$0xff]
  %v85 = vld [vmem:[%s1 + $0x30] sm:$0xff]
  %v86 = vld [vmem:[%s1 + $0x38] sm:$0xff]
  %v87 = vld [vmem:[%s1 + $0x40] sm:$0xff]
  %v88 = vld [vmem:[%s1 + $0x48] sm:$0xff]
  %v89 = vld [vmem:[%s1 + $0x50] sm:$0xff]
  %v90 = vld [vmem:[%s1 + $0x58] sm:$0xff]
  %v91 = vld [vmem:[%s1 + $0x60] sm:$0xff]
  %v92 = vld [vmem:[%s1 + $0x68] sm:$0xff]
  %v93 = vld [vmem:[%s1 + $0x70] sm:$0xff]
  %v94 = vld [vmem:[%s1 + $0x78] sm:$0xff]
  %v95 = vld [vmem:[%s1 + $0x80] sm:$0xff]
  %v96 = vld [vmem:[%s1 + $0x88] sm:$0xff]
  %v97 = vld [vmem:[%s1 + $0x90] sm:$0xff]
  %v98 = vld [vmem:[%s1 + $0x98] sm:$0xff]
  %v99 = vld [vmem:[%s1 + $0xa0] sm:$0xff]
  %v100 = vld [vmem:[%s1 + $0xa8] sm:$0xff]
  %v101 = vld [vmem:[%s1 + $0xb0] sm:$0xff]
  %v102 = vld [vmem:[%s1 + $0xb8] sm:$0xff]
  %v103 = vld [vmem:[%s1 + $0xc0] sm:$0xff]
  %v104 = vld [vmem:[%s1 + $0xc8] sm:$0xff]
  %v105 = vld [vmem:[%s1 + $0xd0] sm:$0xff]
  %v106 = vld [vmem:[%s1 + $0xd8] sm:$0xff]
  %v107 = vld [vmem:[%s1 + $0xe0] sm:$0xff]
  %v108 = vld [vmem:[%s1 + $0xe8] sm:$0xff]
  %v109 = vld [vmem:[%s1 + $0xf0] sm:$0xff]
  %v110 = vld [vmem:[%s1 + $0xf8] sm:$0xff]
  %v111 = vld [vmem:[%s1 + $0x100] sm:$0xff]
  %v112 = vld [vmem:[%s1 + $0x108] sm:$0xff]
  %v113 = vld [vmem:[%s1 + $0x110] sm:$0xff]
  %v114 = vld [vmem:[%s1 + $0x118] sm:$0xff]
  %v115 = vld [vmem:[%s1 + $0x120] sm:$0xff]
  %v116 = vld [vmem:[%s1 + $0x128] sm:$0xff]
  %v117 = vld [vmem:[%s1 + $0x130] sm:$0xff]
  %v118 = vld [vmem:[%s1 + $0x138] sm:$0xff]
  %v119 = vld [vmem:[%s1 + $0x140] sm:$0xff]
  %v120 = vld [vmem:[%s1 + $0x148] sm:$0xff]
  %v121 = vld [vmem:[%s1 + $0x150] sm:$0xff]
  %v122 = vld [vmem:[%s1 + $0x158] sm:$0xff]
  %v123 = vld [vmem:[%s1 + $0x160] sm:$0xff]
  %v124 = vld [vmem:[%s1 + $0x168] sm:$0xff]
  %v125 = vld [vmem:[%s1 + $0x170] sm:$0xff]
  %v126 = vld [vmem:[%s1 + $0x178] sm:$0xff]
  %v127 = vld [vmem:[%s1 + $0x180] sm:$0xff]
  %v128 = vld [vmem:[%s1 + $0x188] sm:$0xff]
  %v129 = vld [vmem:[%s1 + $0x190] sm:$0xff]
  %v130 = vld [vmem:[%s1 + $0x198] sm:$0xff]
  %v131 = vld [vmem:[%s1 + $0x1a0] sm:$0xff]
  %v132 = vld [vmem:[%s1 + $0x1a8] sm:$0xff]
  %v133 = vld [vmem:[%s1 + $0x1b0] sm:$0xff]
  %v134 = vld [vmem:[%s1 + $0x1b8] sm:$0xff]
  %v135 = vld [vmem:[%s1 + $0x1c0] sm:$0xff]
  %v136 = vld [vmem:[%s1 + $0x1c8] sm:$0xff]
  %v137 = vld [vmem:[%s1 + $0x1d0] sm:$0xff]
  %v138 = vld [vmem:[%s1 + $0x1d8] sm:$0xff]
  %v139 = vld [vmem:[%s1 + $0x1e0] sm:$0xff]
  %v140 = vld [vmem:[%s1 + $0x1e8] sm:$0xff]
  %v141 = vld [vmem:[%s1 + $0x1f0] sm:$0xff]
  %v142 = vld [vmem:[%s1 + $0x1f8] sm:$0xff]
  %v143 = vld [vmem:[%s1 + $0x200] sm:$0xff]
  %v144 = vld [vmem:[%s1 + $0x208] sm:$0xff]
  %v145 = vld [vmem:[%s1 + $0x210] sm:$0xff]
  %v146 = vld [vmem:[%s1 + $0x218] sm:$0xff]
  %v147 = vld [vmem:[%s1 + $0x220] sm:$0xff]
  %v148 = vld [vmem:[%s1 + $0x228] sm:$0xff]
  %v149 = vld [vmem:[%s1 + $0x230] sm:$0xff]
  %v150 = vld [vmem:[%s1 + $0x238] sm:$0xff]
  %v151 = vld [vmem:[%s2] sm:$0x1]
  %v153 = vperm.slane %v151, 0
  %vm155 = vcmask 523264
  %v157 = vsel %vm155, %v18, 0
  %v160 = vsel %vm155, %v23, 0
  %v163 = vsel %vm155, %v28, 0
  %v166 = vsel %vm155, %v33, 0
  %v169 = vsel %vm155, %v38, 0
  %v172 = vsel %vm155, %v43, 0
  %v175 = vsel %vm155, %v48, 0
  %v178 = vsel %vm155, %v53, 0
  %v181 = vsel %vm155, %v58, 0
  %v184 = vsel %vm155, %v63, 0
  %v187 = vsel %vm155, %v68, 0
  %v190 = vsel %vm155, %v73, 0
  %v193 = vsel %vm155, %v78, 0
  %195 = vmatpush.msra.mxu0 %v94
  %196 = vmatpush.msra.mxu0 %v93
  %197 = vmatpush.msra.mxu0 %v92
  %198 = vmatpush.msra.mxu0 %v91
  %199 = vmatpush.msra.mxu0 %v90
  %200 = vmatpush.msra.mxu0 %v89
  %201 = vmatpush.msra.mxu0 %v88
  %202 = vmatpush.msra.mxu0 %v87
  %203 = vmatpush.msra.mxu0 %v86
  %204 = vmatpush.msra.mxu0 %v85
  %205 = vmatpush.msra.mxu0 %v84
  %206 = vmatpush.msra.mxu0 %v83
  %207 = vmatpush.msra.mxu0 %v82
  %208 = vmatpush.msra.mxu0 %v81
  %209 = vmatpush.msra.mxu0 %v80
  %210 = vmatpush.msra.mxu0 %v79
  %211 = vmatmul.f32.gmra.mxu0 %v14
  %v212 = vpop.f32.mrf.mxu0
  %v213 = vadd.f32 %v153, %v212
  %214 = vmatmul.f32.gmra.mxu0 %v19
  %v215 = vpop.f32.mrf.mxu0
  %v216 = vadd.f32 %v153, %v215
  %217 = vmatmul.f32.gmra.mxu0 %v24
  %v218 = vpop.f32.mrf.mxu0
  %v219 = vadd.f32 %v153, %v218
  %220 = vmatmul.f32.gmra.mxu0 %v29
  %v221 = vpop.f32.mrf.mxu0
  %v222 = vadd.f32 %v153, %v221
  %223 = vmatmul.f32.gmra.mxu0 %v34
  %v224 = vpop.f32.mrf.mxu0
  %v225 = vadd.f32 %v153, %v224
  %226 = vmatmul.f32.gmra.mxu0 %v39
  %v227 = vpop.f32.mrf.mxu0
  %v228 = vadd.f32 %v153, %v227
  %229 = vmatmul.f32.gmra.mxu0 %v44
  %v230 = vpop.f32.mrf.mxu0
  %v231 = vadd.f32 %v153, %v230
  %232 = vmatmul.f32.gmra.mxu0 %v49
  %v233 = vpop.f32.mrf.mxu0
  %v234 = vadd.f32 %v153, %v233
  %235 = vmatmul.f32.gmra.mxu0 %v54
  %v236 = vpop.f32.mrf.mxu0
  %v237 = vadd.f32 %v153, %v236
  %238 = vmatmul.f32.gmra.mxu0 %v59
  %v239 = vpop.f32.mrf.mxu0
  %v240 = vadd.f32 %v153, %v239
  %241 = vmatmul.f32.gmra.mxu0 %v64
  %v242 = vpop.f32.mrf.mxu0
  %v243 = vadd.f32 %v153, %v242
  %244 = vmatmul.f32.gmra.mxu0 %v69
  %v245 = vpop.f32.mrf.mxu0
  %v246 = vadd.f32 %v153, %v245
  %247 = vmatmul.f32.gmra.mxu0 %v74
  %v248 = vpop.f32.mrf.mxu0
  %v249 = vadd.f32 %v153, %v248
  %250 = vdwg.mxu0
  %251 = vmatpush.msra.mxu0 %v110
  %252 = vmatpush.msra.mxu0 %v109
  %253 = vmatpush.msra.mxu0 %v108
  %254 = vmatpush.msra.mxu0 %v107
  %255 = vmatpush.msra.mxu0 %v106
  %256 = vmatpush.msra.mxu0 %v105
  %257 = vmatpush.msra.mxu0 %v104
  %258 = vmatpush.msra.mxu0 %v103
  %259 = vmatpush.msra.mxu0 %v102
  %260 = vmatpush.msra.mxu0 %v101
  %261 = vmatpush.msra.mxu0 %v100
  %262 = vmatpush.msra.mxu0 %v99
  %263 = vmatpush.msra.mxu0 %v98
  %264 = vmatpush.msra.mxu0 %v97
  %265 = vmatpush.msra.mxu0 %v96
  %266 = vmatpush.msra.mxu0 %v95
  %267 = vmatmul.f32.gmra.mxu0 %v15
  %v268 = vpop.f32.mrf.mxu0
  %v269 = vadd.f32 %v213, %v268
  %270 = vmatmul.f32.gmra.mxu0 %v20
  %v271 = vpop.f32.mrf.mxu0
  %v272 = vadd.f32 %v216, %v271
  %273 = vmatmul.f32.gmra.mxu0 %v25
  %v274 = vpop.f32.mrf.mxu0
  %v275 = vadd.f32 %v219, %v274
  %276 = vmatmul.f32.gmra.mxu0 %v30
  %v277 = vpop.f32.mrf.mxu0
  %v278 = vadd.f32 %v222, %v277
  %279 = vmatmul.f32.gmra.mxu0 %v35
  %v280 = vpop.f32.mrf.mxu0
  %v281 = vadd.f32 %v225, %v280
  %282 = vmatmul.f32.gmra.mxu0 %v40
  %v283 = vpop.f32.mrf.mxu0
  %v284 = vadd.f32 %v228, %v283
  %285 = vmatmul.f32.gmra.mxu0 %v45
  %v286 = vpop.f32.mrf.mxu0
  %v287 = vadd.f32 %v231, %v286
  %288 = vmatmul.f32.gmra.mxu0 %v50
  %v289 = vpop.f32.mrf.mxu0
  %v290 = vadd.f32 %v234, %v289
  %291 = vmatmul.f32.gmra.mxu0 %v55
  %v292 = vpop.f32.mrf.mxu0
  %v293 = vadd.f32 %v237, %v292
  %294 = vmatmul.f32.gmra.mxu0 %v60
  %v295 = vpop.f32.mrf.mxu0
  %v296 = vadd.f32 %v240, %v295
  %297 = vmatmul.f32.gmra.mxu0 %v65
  %v298 = vpop.f32.mrf.mxu0
  %v299 = vadd.f32 %v243, %v298
  %300 = vmatmul.f32.gmra.mxu0 %v70
  %v301 = vpop.f32.mrf.mxu0
  %v302 = vadd.f32 %v246, %v301
  %303 = vmatmul.f32.gmra.mxu0 %v75
  %v304 = vpop.f32.mrf.mxu0
  %v305 = vadd.f32 %v249, %v304
  %306 = vdwg.mxu0
  %307 = vmatpush.msra.mxu0 %v126
  %308 = vmatpush.msra.mxu0 %v125
  %309 = vmatpush.msra.mxu0 %v124
  %310 = vmatpush.msra.mxu0 %v123
  %311 = vmatpush.msra.mxu0 %v122
  %312 = vmatpush.msra.mxu0 %v121
  %313 = vmatpush.msra.mxu0 %v120
  %314 = vmatpush.msra.mxu0 %v119
  %315 = vmatpush.msra.mxu0 %v118
  %316 = vmatpush.msra.mxu0 %v117
  %317 = vmatpush.msra.mxu0 %v116
  %318 = vmatpush.msra.mxu0 %v115
  %319 = vmatpush.msra.mxu0 %v114
  %320 = vmatpush.msra.mxu0 %v113
  %321 = vmatpush.msra.mxu0 %v112
  %322 = vmatpush.msra.mxu0 %v111
  %323 = vmatmul.f32.gmra.mxu0 %v16
  %v324 = vpop.f32.mrf.mxu0
  %v325 = vadd.f32 %v269, %v324
  %326 = vmatmul.f32.gmra.mxu0 %v21
  %v327 = vpop.f32.mrf.mxu0
  %v328 = vadd.f32 %v272, %v327
  %329 = vmatmul.f32.gmra.mxu0 %v26
  %v330 = vpop.f32.mrf.mxu0
  %v331 = vadd.f32 %v275, %v330
  %332 = vmatmul.f32.gmra.mxu0 %v31
  %v333 = vpop.f32.mrf.mxu0
  %v334 = vadd.f32 %v278, %v333
  %335 = vmatmul.f32.gmra.mxu0 %v36
  %v336 = vpop.f32.mrf.mxu0
  %v337 = vadd.f32 %v281, %v336
  %338 = vmatmul.f32.gmra.mxu0 %v41
  %v339 = vpop.f32.mrf.mxu0
  %v340 = vadd.f32 %v284, %v339
  %341 = vmatmul.f32.gmra.mxu0 %v46
  %v342 = vpop.f32.mrf.mxu0
  %v343 = vadd.f32 %v287, %v342
  %344 = vmatmul.f32.gmra.mxu0 %v51
  %v345 = vpop.f32.mrf.mxu0
  %v346 = vadd.f32 %v290, %v345
  %347 = vmatmul.f32.gmra.mxu0 %v56
  %v348 = vpop.f32.mrf.mxu0
  %v349 = vadd.f32 %v293, %v348
  %350 = vmatmul.f32.gmra.mxu0 %v61
  %v351 = vpop.f32.mrf.mxu0
  %v352 = vadd.f32 %v296, %v351
  %353 = vmatmul.f32.gmra.mxu0 %v66
  %v354 = vpop.f32.mrf.mxu0
  %v355 = vadd.f32 %v299, %v354
  %356 = vmatmul.f32.gmra.mxu0 %v71
  %v357 = vpop.f32.mrf.mxu0
  %v358 = vadd.f32 %v302, %v357
  %359 = vmatmul.f32.gmra.mxu0 %v76
  %v360 = vpop.f32.mrf.mxu0
  %v361 = vadd.f32 %v305, %v360
  %362 = vdwg.mxu0
  %363 = vmatpush.msra.mxu0 %v142
  %364 = vmatpush.msra.mxu0 %v141
  %365 = vmatpush.msra.mxu0 %v140
  %366 = vmatpush.msra.mxu0 %v139
  %367 = vmatpush.msra.mxu0 %v138
  %368 = vmatpush.msra.mxu0 %v137
  %369 = vmatpush.msra.mxu0 %v136
  %370 = vmatpush.msra.mxu0 %v135
  %371 = vmatpush.msra.mxu0 %v134
  %372 = vmatpush.msra.mxu0 %v133
  %373 = vmatpush.msra.mxu0 %v132
  %374 = vmatpush.msra.mxu0 %v131
  %375 = vmatpush.msra.mxu0 %v130
  %376 = vmatpush.msra.mxu0 %v129
  %377 = vmatpush.msra.mxu0 %v128
  %378 = vmatpush.msra.mxu0 %v127
  %379 = vmatmul.f32.gmra.mxu0 %v17
  %v380 = vpop.f32.mrf.mxu0
  %v381 = vadd.f32 %v325, %v380
  %382 = vmatmul.f32.gmra.mxu0 %v22
  %v383 = vpop.f32.mrf.mxu0
  %v384 = vadd.f32 %v328, %v383
  %385 = vmatmul.f32.gmra.mxu0 %v27
  %v386 = vpop.f32.mrf.mxu0
  %v387 = vadd.f32 %v331, %v386
  %388 = vmatmul.f32.gmra.mxu0 %v32
  %v389 = vpop.f32.mrf.mxu0
  %v390 = vadd.f32 %v334, %v389
  %391 = vmatmul.f32.gmra.mxu0 %v37
  %v392 = vpop.f32.mrf.mxu0
  %v393 = vadd.f32 %v337, %v392
  %394 = vmatmul.f32.gmra.mxu0 %v42
  %v395 = vpop.f32.mrf.mxu0
  %v396 = vadd.f32 %v340, %v395
  %397 = vmatmul.f32.gmra.mxu0 %v47
  %v398 = vpop.f32.mrf.mxu0
  %v399 = vadd.f32 %v343, %v398
  %400 = vmatmul.f32.gmra.mxu0 %v52
  %v401 = vpop.f32.mrf.mxu0
  %v402 = vadd.f32 %v346, %v401
  %403 = vmatmul.f32.gmra.mxu0 %v57
  %v404 = vpop.f32.mrf.mxu0
  %v405 = vadd.f32 %v349, %v404
  %406 = vmatmul.f32.gmra.mxu0 %v62
  %v407 = vpop.f32.mrf.mxu0
  %v408 = vadd.f32 %v352, %v407
  %409 = vmatmul.f32.gmra.mxu0 %v67
  %v410 = vpop.f32.mrf.mxu0
  %v411 = vadd.f32 %v355, %v410
  %412 = vmatmul.f32.gmra.mxu0 %v72
  %v413 = vpop.f32.mrf.mxu0
  %v414 = vadd.f32 %v358, %v413
  %415 = vmatmul.f32.gmra.mxu0 %v77
  %v416 = vpop.f32.mrf.mxu0
  %v417 = vadd.f32 %v361, %v416
  %418 = vdwg.mxu0
  %419 = vmatpush.msra.mxu0 0.0
  %420 = vmatpush.msra.mxu0 0.0
  %421 = vmatpush.msra.mxu0 0.0
  %422 = vmatpush.msra.mxu0 0.0
  %423 = vmatpush.msra.mxu0 0.0
  %424 = vmatpush.msra.mxu0 0.0
  %425 = vmatpush.msra.mxu0 0.0
  %426 = vmatpush.msra.mxu0 0.0
  %427 = vmatpush.msra.mxu0 %v150
  %428 = vmatpush.msra.mxu0 %v149
  %429 = vmatpush.msra.mxu0 %v148
  %430 = vmatpush.msra.mxu0 %v147
  %431 = vmatpush.msra.mxu0 %v146
  %432 = vmatpush.msra.mxu0 %v145
  %433 = vmatpush.msra.mxu0 %v144
  %434 = vmatpush.msra.mxu0 %v143
  %435 = vmatmul.f32.gmra.mxu0 %v157
  %v436 = vpop.f32.mrf.mxu0
  %v437 = vadd.f32 %v381, %v436
  %438 = vmatmul.f32.gmra.mxu0 %v160
  %v439 = vpop.f32.mrf.mxu0
  %v440 = vadd.f32 %v384, %v439
  %441 = vmatmul.f32.gmra.mxu0 %v163
  %v442 = vpop.f32.mrf.mxu0
  %v443 = vadd.f32 %v387, %v442
  %444 = vmatmul.f32.gmra.mxu0 %v166
  %v445 = vpop.f32.mrf.mxu0
  %v446 = vadd.f32 %v390, %v445
  %447 = vmatmul.f32.gmra.mxu0 %v169
  %v448 = vpop.f32.mrf.mxu0
  %v449 = vadd.f32 %v393, %v448
  %450 = vmatmul.f32.gmra.mxu0 %v172
  %v451 = vpop.f32.mrf.mxu0
  %v452 = vadd.f32 %v396, %v451
  %453 = vmatmul.f32.gmra.mxu0 %v175
  %v454 = vpop.f32.mrf.mxu0
  %v455 = vadd.f32 %v399, %v454
  %456 = vmatmul.f32.gmra.mxu0 %v178
  %v457 = vpop.f32.mrf.mxu0
  %v458 = vadd.f32 %v402, %v457
  %459 = vmatmul.f32.gmra.mxu0 %v181
  %v460 = vpop.f32.mrf.mxu0
  %v461 = vadd.f32 %v405, %v460
  %462 = vmatmul.f32.gmra.mxu0 %v184
  %v463 = vpop.f32.mrf.mxu0
  %v464 = vadd.f32 %v408, %v463
  %465 = vmatmul.f32.gmra.mxu0 %v187
  %v466 = vpop.f32.mrf.mxu0
  %v467 = vadd.f32 %v411, %v466
  %468 = vmatmul.f32.gmra.mxu0 %v190
  %v469 = vpop.f32.mrf.mxu0
  %v470 = vadd.f32 %v414, %v469
  %471 = vmatmul.f32.gmra.mxu0 %v193
  %v472 = vpop.f32.mrf.mxu0
  %v473 = vadd.f32 %v417, %v472
  %474 = vdwg.mxu0
  %v475 = vmax.f32 %v437, 0.0
  %v476 = vmax.f32 %v440, 0.0
  %v477 = vmax.f32 %v443, 0.0
  %v478 = vmax.f32 %v446, 0.0
  %v479 = vmax.f32 %v449, 0.0
  %v480 = vmax.f32 %v452, 0.0
  %v481 = vmax.f32 %v455, 0.0
  %v482 = vmax.f32 %v458, 0.0
  %v483 = vmax.f32 %v461, 0.0
  %v484 = vmax.f32 %v464, 0.0
  %v485 = vmax.f32 %v467, 0.0
  %v486 = vmax.f32 %v470, 0.0
  %v487 = vmax.f32 %v473, 0.0
  %vm488 = vcmask 261120
  %489 = vst.msk [vmem:[%s3] sm:$0xff] %vm488, %v475
  %490 = vst.msk [vmem:[%s3 + $0x8] sm:$0xff] %vm488, %v476
  %491 = vst.msk [vmem:[%s3 + $0x10] sm:$0xff] %vm488, %v477
  %492 = vst.msk [vmem:[%s3 + $0x18] sm:$0xff] %vm488, %v478
  %493 = vst.msk [vmem:[%s3 + $0x20] sm:$0xff] %vm488, %v479
  %494 = vst.msk [vmem:[%s3 + $0x28] sm:$0xff] %vm488, %v480
  %495 = vst.msk [vmem:[%s3 + $0x30] sm:$0xff] %vm488, %v481
  %496 = vst.msk [vmem:[%s3 + $0x38] sm:$0xff] %vm488, %v482
  %497 = vst.msk [vmem:[%s3 + $0x40] sm:$0xff] %vm488, %v483
  %498 = vst.msk [vmem:[%s3 + $0x48] sm:$0xff] %vm488, %v484
  %499 = vst.msk [vmem:[%s3 + $0x50] sm:$0xff] %vm488, %v485
  %500 = vst.msk [vmem:[%s3 + $0x58] sm:$0xff] %vm488, %v486
  %501 = vst.msk [vmem:[%s3 + $0x60] sm:$0xff] %vm488, %v487
  // Predicated region
  $region14: #{cnn_block_forward.6} parent=0 // pred_check
    _
  $region15: #{cnn_block_forward.6} parent=0 // pred_check_branch
    %503 = sbr.rel (0) target = $region17
  $region16: #{cnn_block_forward.6} parent=0 // pred_region
    _
  $region17: #{cnn_block_forward.6} parent=0 // pred_fallthru
    _
  // Predicated region
  $region18: #{cnn_block_forward.6} parent=0 // pred_check
    _
  $region19: #{cnn_block_forward.6} parent=0 // pred_check_branch
    %505 = sbr.rel (0) target = $region21
  $region20: #{cnn_block_forward.6} parent=0 // pred_region
    _
  $region21: #{cnn_block_forward.6} parent=0 // pred_fallthru
    _

// kernel: cnn_block_forward.7
$region0: #{cnn_block_forward.7}
  #allocation0 [shape = 'u32[]', space=smem, size = 0x4, offset = 0x4, fixed_abs, tag = 'smem constant byte address 0x4 - core index']
  #allocation1 [shape = 'u32[72,128]{1,0:T(1,128)}', space=vmem, size = 0x9000, scoped, tag = 'internal scratch']
  %s0 = inlined_call_operand.vmem [shape: f32[8,1568], index: 0, kind: input, shape index: {}]
  %s1 = inlined_call_operand.vmem [shape: f32[1568,32], index: 1, kind: input, shape index: {}]
  %s2 = inlined_call_operand.vmem [shape: f32[1,32], index: 2, kind: input, shape index: {}]
  %s3 = inlined_call_operand.vmem [shape: f32[8,32], index: 3, kind: output, shape index: {}]
  %s4 = sld [smem:[#allocation0]]
  $region22: #{cnn_block_forward.7} parent=0
    _
  %s6 = ssub.s32 1, %s4
  %s7 = scalar_select 0, %s6, %s4
  // Predicated region
  $region2: #{cnn_block_forward.7} parent=0 // pred_check
    _
  $region3: #{cnn_block_forward.7} parent=0 // pred_check_branch
    %9 = sbr.rel (0) target = $region5
  $region4: #{cnn_block_forward.7} parent=0 // pred_region
    _
  $region5: #{cnn_block_forward.7} parent=0 // pred_fallthru
    _
  // Predicated region
  $region6: #{cnn_block_forward.7} parent=0 // pred_check
    _
  $region7: #{cnn_block_forward.7} parent=0 // pred_check_branch
    %11 = sbr.rel (0) target = $region9
  $region8: #{cnn_block_forward.7} parent=0 // pred_region
    _
  $region9: #{cnn_block_forward.7} parent=0 // pred_fallthru
    _
  // Predicated region
  $region10: #{cnn_block_forward.7} parent=0 // pred_check
    _
  $region11: #{cnn_block_forward.7} parent=0 // pred_check_branch
    %13 = sbr.rel (0) target = $region13
  $region12: #{cnn_block_forward.7} parent=0 // pred_region
    _
  $region13: #{cnn_block_forward.7} parent=0 // pred_fallthru
    _
  %v14 = vld [vmem:[%s0] sm:$0xff]
  %v15 = vld [vmem:[%s0 + $0x8] sm:$0xff]
  %v16 = vld [vmem:[%s0 + $0x10] sm:$0xff]
  %v17 = vld [vmem:[%s0 + $0x18] sm:$0xff]
  %v18 = vld [vmem:[%s0 + $0x20] sm:$0xff]
  %v19 = vld [vmem:[%s0 + $0x28] sm:$0xff]
  %v20 = vld [vmem:[%s0 + $0x30] sm:$0xff]
  %v21 = vld [vmem:[%s0 + $0x38] sm:$0xff]
  %v22 = vld [vmem:[%s0 + $0x40] sm:$0xff]
  %v23 = vld [vmem:[%s0 + $0x48] sm:$0xff]
  %v24 = vld [vmem:[%s0 + $0x50] sm:$0xff]
  %v25 = vld [vmem:[%s0 + $0x58] sm:$0xff]
  %v26 = vld [vmem:[%s0 + $0x60] sm:$0xff]
  %v27 = vld [vmem:[%s1] sm:$0xff]
  %v28 = vld [vmem:[%s1 + $0x8] sm:$0xff]
  %v29 = vld [vmem:[%s1 + $0x10] sm:$0xff]
  %v30 = vld [vmem:[%s1 + $0x18] sm:$0xff]
  %v31 = vld [vmem:[%s1 + $0x20] sm:$0xff]
  %v32 = vld [vmem:[%s1 + $0x28] sm:$0xff]
  %v33 = vld [vmem:[%s1 + $0x30] sm:$0xff]
  %v34 = vld [vmem:[%s1 + $0x38] sm:$0xff]
  %v35 = vld [vmem:[%s1 + $0x40] sm:$0xff]
  %v36 = vld [vmem:[%s1 + $0x48] sm:$0xff]
  %v37 = vld [vmem:[%s1 + $0x50] sm:$0xff]
  %v38 = vld [vmem:[%s1 + $0x58] sm:$0xff]
  %v39 = vld [vmem:[%s1 + $0x60] sm:$0xff]
  %v40 = vld [vmem:[%s1 + $0x68] sm:$0xff]
  %v41 = vld [vmem:[%s1 + $0x70] sm:$0xff]
  %v42 = vld [vmem:[%s1 + $0x78] sm:$0xff]
  %v43 = vld [vmem:[%s1 + $0x80] sm:$0xff]
  %v44 = vld [vmem:[%s1 + $0x88] sm:$0xff]
  %v45 = vld [vmem:[%s1 + $0x90] sm:$0xff]
  %v46 = vld [vmem:[%s1 + $0x98] sm:$0xff]
  %v47 = vld [vmem:[%s1 + $0xa0] sm:$0xff]
  %v48 = vld [vmem:[%s1 + $0xa8] sm:$0xff]
  %v49 = vld [vmem:[%s1 + $0xb0] sm:$0xff]
  %v50 = vld [vmem:[%s1 + $0xb8] sm:$0xff]
  %v51 = vld [vmem:[%s1 + $0xc0] sm:$0xff]
  %v52 = vld [vmem:[%s1 + $0xc8] sm:$0xff]
  %v53 = vld [vmem:[%s1 + $0xd0] sm:$0xff]
  %v54 = vld [vmem:[%s1 + $0xd8] sm:$0xff]
  %v55 = vld [vmem:[%s1 + $0xe0] sm:$0xff]
  %v56 = vld [vmem:[%s1 + $0xe8] sm:$0xff]
  %v57 = vld [vmem:[%s1 + $0xf0] sm:$0xff]
  %v58 = vld [vmem:[%s1 + $0xf8] sm:$0xff]
  %v59 = vld [vmem:[%s1 + $0x100] sm:$0xff]
  %v60 = vld [vmem:[%s1 + $0x108] sm:$0xff]
  %v61 = vld [vmem:[%s1 + $0x110] sm:$0xff]
  %v62 = vld [vmem:[%s1 + $0x118] sm:$0xff]
  %v63 = vld [vmem:[%s1 + $0x120] sm:$0xff]
  %v64 = vld [vmem:[%s1 + $0x128] sm:$0xff]
  %v65 = vld [vmem:[%s1 + $0x130] sm:$0xff]
  %v66 = vld [vmem:[%s1 + $0x138] sm:$0xff]
  %v67 = vld [vmem:[%s1 + $0x140] sm:$0xff]
  %v68 = vld [vmem:[%s1 + $0x148] sm:$0xff]
  %v69 = vld [vmem:[%s1 + $0x150] sm:$0xff]
  %v70 = vld [vmem:[%s1 + $0x158] sm:$0xff]
  %v71 = vld [vmem:[%s1 + $0x160] sm:$0xff]
  %v72 = vld [vmem:[%s1 + $0x168] sm:$0xff]
  %v73 = vld [vmem:[%s1 + $0x170] sm:$0xff]
  %v74 = vld [vmem:[%s1 + $0x178] sm:$0xff]
  %v75 = vld [vmem:[%s1 + $0x180] sm:$0xff]
  %v76 = vld [vmem:[%s1 + $0x188] sm:$0xff]
  %v77 = vld [vmem:[%s1 + $0x190] sm:$0xff]
  %v78 = vld [vmem:[%s1 + $0x198] sm:$0xff]
  %v79 = vld [vmem:[%s1 + $0x1a0] sm:$0xff]
  %v80 = vld [vmem:[%s1 + $0x1a8] sm:$0xff]
  %v81 = vld [vmem:[%s1 + $0x1b0] sm:$0xff]
  %v82 = vld [vmem:[%s1 + $0x1b8] sm:$0xff]
  %v83 = vld [vmem:[%s1 + $0x1c0] sm:$0xff]
  %v84 = vld [vmem:[%s1 + $0x1c8] sm:$0xff]
  %v85 = vld [vmem:[%s1 + $0x1d0] sm:$0xff]
  %v86 = vld [vmem:[%s1 + $0x1d8] sm:$0xff]
  %v87 = vld [vmem:[%s1 + $0x1e0] sm:$0xff]
  %v88 = vld [vmem:[%s1 + $0x1e8] sm:$0xff]
  %v89 = vld [vmem:[%s1 + $0x1f0] sm:$0xff]
  %v90 = vld [vmem:[%s1 + $0x1f8] sm:$0xff]
  %v91 = vld [vmem:[%s1 + $0x200] sm:$0xff]
  %v92 = vld [vmem:[%s1 + $0x208] sm:$0xff]
  %v93 = vld [vmem:[%s1 + $0x210] sm:$0xff]
  %v94 = vld [vmem:[%s1 + $0x218] sm:$0xff]
  %v95 = vld [vmem:[%s1 + $0x220] sm:$0xff]
  %v96 = vld [vmem:[%s1 + $0x228] sm:$0xff]
  %v97 = vld [vmem:[%s1 + $0x230] sm:$0xff]
  %v98 = vld [vmem:[%s1 + $0x238] sm:$0xff]
  %v99 = vld [vmem:[%s1 + $0x240] sm:$0xff]
  %v100 = vld [vmem:[%s1 + $0x248] sm:$0xff]
  %v101 = vld [vmem:[%s1 + $0x250] sm:$0xff]
  %v102 = vld [vmem:[%s1 + $0x258] sm:$0xff]
  %v103 = vld [vmem:[%s1 + $0x260] sm:$0xff]
  %v104 = vld [vmem:[%s1 + $0x268] sm:$0xff]
  %v105 = vld [vmem:[%s1 + $0x270] sm:$0xff]
  %v106 = vld [vmem:[%s1 + $0x278] sm:$0xff]
  %v107 = vld [vmem:[%s1 + $0x280] sm:$0xff]
  %v108 = vld [vmem:[%s1 + $0x288] sm:$0xff]
  %v109 = vld [vmem:[%s1 + $0x290] sm:$0xff]
  %v110 = vld [vmem:[%s1 + $0x298] sm:$0xff]
  %v111 = vld [vmem:[%s1 + $0x2a0] sm:$0xff]
  %v112 = vld [vmem:[%s1 + $0x2a8] sm:$0xff]
  %v113 = vld [vmem:[%s1 + $0x2b0] sm:$0xff]
  %v114 = vld [vmem:[%s1 + $0x2b8] sm:$0xff]
  %v115 = vld [vmem:[%s1 + $0x2c0] sm:$0xff]
  %v116 = vld [vmem:[%s1 + $0x2c8] sm:$0xff]
  %v117 = vld [vmem:[%s1 + $0x2d0] sm:$0xff]
  %v118 = vld [vmem:[%s1 + $0x2d8] sm:$0xff]
  %v119 = vld [vmem:[%s1 + $0x2e0] sm:$0xff]
  %v120 = vld [vmem:[%s1 + $0x2e8] sm:$0xff]
  %v121 = vld [vmem:[%s1 + $0x2f0] sm:$0xff]
  %v122 = vld [vmem:[%s1 + $0x2f8] sm:$0xff]
  %v123 = vld [vmem:[%s1 + $0x300] sm:$0xff]
  %v124 = vld [vmem:[%s1 + $0x308] sm:$0xff]
  %v125 = vld [vmem:[%s1 + $0x310] sm:$0xff]
  %v126 = vld [vmem:[%s1 + $0x318] sm:$0xff]
  %v127 = vld [vmem:[%s1 + $0x320] sm:$0xff]
  %v128 = vld [vmem:[%s1 + $0x328] sm:$0xff]
  %v129 = vld [vmem:[%s1 + $0x330] sm:$0xff]
  %v130 = vld [vmem:[%s1 + $0x338] sm:$0xff]
  %v131 = vld [vmem:[%s1 + $0x340] sm:$0xff]
  %v132 = vld [vmem:[%s1 + $0x348] sm:$0xff]
  %v133 = vld [vmem:[%s1 + $0x350] sm:$0xff]
  %v134 = vld [vmem:[%s1 + $0x358] sm:$0xff]
  %v135 = vld [vmem:[%s1 + $0x360] sm:$0xff]
  %v136 = vld [vmem:[%s1 + $0x368] sm:$0xff]
  %v137 = vld [vmem:[%s1 + $0x370] sm:$0xff]
  %v138 = vld [vmem:[%s1 + $0x378] sm:$0xff]
  %v139 = vld [vmem:[%s1 + $0x380] sm:$0xff]
  %v140 = vld [vmem:[%s1 + $0x388] sm:$0xff]
  %v141 = vld [vmem:[%s1 + $0x390] sm:$0xff]
  %v142 = vld [vmem:[%s1 + $0x398] sm:$0xff]
  %v143 = vld [vmem:[%s1 + $0x3a0] sm:$0xff]
  %v144 = vld [vmem:[%s1 + $0x3a8] sm:$0xff]
  %v145 = vld [vmem:[%s1 + $0x3b0] sm:$0xff]
  %v146 = vld [vmem:[%s1 + $0x3b8] sm:$0xff]
  %v147 = vld [vmem:[%s1 + $0x3c0] sm:$0xff]
  %v148 = vld [vmem:[%s1 + $0x3c8] sm:$0xff]
  %v149 = vld [vmem:[%s1 + $0x3d0] sm:$0xff]
  %v150 = vld [vmem:[%s1 + $0x3d8] sm:$0xff]
  %v151 = vld [vmem:[%s1 + $0x3e0] sm:$0xff]
  %v152 = vld [vmem:[%s1 + $0x3e8] sm:$0xff]
  %v153 = vld [vmem:[%s1 + $0x3f0] sm:$0xff]
  %v154 = vld [vmem:[%s1 + $0x3f8] sm:$0xff]
  %v155 = vld [vmem:[%s1 + $0x400] sm:$0xff]
  %v156 = vld [vmem:[%s1 + $0x408] sm:$0xff]
  %v157 = vld [vmem:[%s1 + $0x410] sm:$0xff]
  %v158 = vld [vmem:[%s1 + $0x418] sm:$0xff]
  %v159 = vld [vmem:[%s1 + $0x420] sm:$0xff]
  %v160 = vld [vmem:[%s1 + $0x428] sm:$0xff]
  %v161 = vld [vmem:[%s1 + $0x430] sm:$0xff]
  %v162 = vld [vmem:[%s1 + $0x438] sm:$0xff]
  %v163 = vld [vmem:[%s1 + $0x440] sm:$0xff]
  %v164 = vld [vmem:[%s1 + $0x448] sm:$0xff]
  %v165 = vld [vmem:[%s1 + $0x450] sm:$0xff]
  %v166 = vld [vmem:[%s1 + $0x458] sm:$0xff]
  %v167 = vld [vmem:[%s1 + $0x460] sm:$0xff]
  %v168 = vld [vmem:[%s1 + $0x468] sm:$0xff]
  %v169 = vld [vmem:[%s1 + $0x470] sm:$0xff]
  %v170 = vld [vmem:[%s1 + $0x478] sm:$0xff]
  %v171 = vld [vmem:[%s1 + $0x480] sm:$0xff]
  %v172 = vld [vmem:[%s1 + $0x488] sm:$0xff]
  %v173 = vld [vmem:[%s1 + $0x490] sm:$0xff]
  %v174 = vld [vmem:[%s1 + $0x498] sm:$0xff]
  %v175 = vld [vmem:[%s1 + $0x4a0] sm:$0xff]
  %v176 = vld [vmem:[%s1 + $0x4a8] sm:$0xff]
  %v177 = vld [vmem:[%s1 + $0x4b0] sm:$0xff]
  %v178 = vld [vmem:[%s1 + $0x4b8] sm:$0xff]
  %v179 = vld [vmem:[%s1 + $0x4c0] sm:$0xff]
  %v180 = vld [vmem:[%s1 + $0x4c8] sm:$0xff]
  %v181 = vld [vmem:[%s1 + $0x4d0] sm:$0xff]
  %v182 = vld [vmem:[%s1 + $0x4d8] sm:$0xff]
  %v183 = vld [vmem:[%s1 + $0x4e0] sm:$0xff]
  %v184 = vld [vmem:[%s1 + $0x4e8] sm:$0xff]
  %v185 = vld [vmem:[%s1 + $0x4f0] sm:$0xff]
  %v186 = vld [vmem:[%s1 + $0x4f8] sm:$0xff]
  %v187 = vld [vmem:[%s1 + $0x500] sm:$0xff]
  %v188 = vld [vmem:[%s1 + $0x508] sm:$0xff]
  %v189 = vld [vmem:[%s1 + $0x510] sm:$0xff]
  %v190 = vld [vmem:[%s1 + $0x518] sm:$0xff]
  %v191 = vld [vmem:[%s1 + $0x520] sm:$0xff]
  %v192 = vld [vmem:[%s1 + $0x528] sm:$0xff]
  %v193 = vld [vmem:[%s1 + $0x530] sm:$0xff]
  %v194 = vld [vmem:[%s1 + $0x538] sm:$0xff]
  %v195 = vld [vmem:[%s1 + $0x540] sm:$0xff]
  %v196 = vld [vmem:[%s1 + $0x548] sm:$0xff]
  %v197 = vld [vmem:[%s1 + $0x550] sm:$0xff]
  %v198 = vld [vmem:[%s1 + $0x558] sm:$0xff]
  %v199 = vld [vmem:[%s1 + $0x560] sm:$0xff]
  %v200 = vld [vmem:[%s1 + $0x568] sm:$0xff]
  %v201 = vld [vmem:[%s1 + $0x570] sm:$0xff]
  %v202 = vld [vmem:[%s1 + $0x578] sm:$0xff]
  %v203 = vld [vmem:[%s1 + $0x580] sm:$0xff]
  %v204 = vld [vmem:[%s1 + $0x588] sm:$0xff]
  %v205 = vld [vmem:[%s1 + $0x590] sm:$0xff]
  %v206 = vld [vmem:[%s1 + $0x598] sm:$0xff]
  %v207 = vld [vmem:[%s1 + $0x5a0] sm:$0xff]
  %v208 = vld [vmem:[%s1 + $0x5a8] sm:$0xff]
  %v209 = vld [vmem:[%s1 + $0x5b0] sm:$0xff]
  %v210 = vld [vmem:[%s1 + $0x5b8] sm:$0xff]
  %v211 = vld [vmem:[%s1 + $0x5c0] sm:$0xff]
  %v212 = vld [vmem:[%s1 + $0x5c8] sm:$0xff]
  %v213 = vld [vmem:[%s1 + $0x5d0] sm:$0xff]
  %v214 = vld [vmem:[%s1 + $0x5d8] sm:$0xff]
  %v215 = vld [vmem:[%s1 + $0x5e0] sm:$0xff]
  %v216 = vld [vmem:[%s1 + $0x5e8] sm:$0xff]
  %v217 = vld [vmem:[%s1 + $0x5f0] sm:$0xff]
  %v218 = vld [vmem:[%s1 + $0x5f8] sm:$0xff]
  %v219 = vld [vmem:[%s1 + $0x600] sm:$0xff]
  %v220 = vld [vmem:[%s1 + $0x608] sm:$0xff]
  %v221 = vld [vmem:[%s1 + $0x610] sm:$0xff]
  %v222 = vld [vmem:[%s1 + $0x618] sm:$0xff]
  %v223 = vld [vmem:[%s2] sm:$0x1]
  %v225 = vperm.slane %v223, 0
  %vm227 = vcmask 261120
  %v229 = vsel %vm227, %v26, 0
  %231 = vmatpush.msra.mxu0 %v42
  %232 = vmatpush.msra.mxu0 %v41
  %233 = vmatpush.msra.mxu0 %v40
  %234 = vmatpush.msra.mxu0 %v39
  %235 = vmatpush.msra.mxu0 %v38
  %236 = vmatpush.msra.mxu0 %v37
  %237 = vmatpush.msra.mxu0 %v36
  %238 = vmatpush.msra.mxu0 %v35
  %239 = vmatpush.msra.mxu0 %v34
  %240 = vmatpush.msra.mxu0 %v33
  %241 = vmatpush.msra.mxu0 %v32
  %242 = vmatpush.msra.mxu0 %v31
  %243 = vmatpush.msra.mxu0 %v30
  %244 = vmatpush.msra.mxu0 %v29
  %245 = vmatpush.msra.mxu0 %v28
  %246 = vmatpush.msra.mxu0 %v27
  %247 = vmatmul.f32.gmra.mxu0 %v14
  %v248 = vpop.f32.mrf.mxu0
  %v249 = vadd.f32 %v225, %v248
  %250 = vdwg.mxu0
  %251 = vmatpush.msra.mxu0 %v58
  %252 = vmatpush.msra.mxu0 %v57
  %253 = vmatpush.msra.mxu0 %v56
  %254 = vmatpush.msra.mxu0 %v55
  %255 = vmatpush.msra.mxu0 %v54
  %256 = vmatpush.msra.mxu0 %v53
  %257 = vmatpush.msra.mxu0 %v52
  %258 = vmatpush.msra.mxu0 %v51
  %259 = vmatpush.msra.mxu0 %v50
  %260 = vmatpush.msra.mxu0 %v49
  %261 = vmatpush.msra.mxu0 %v48
  %262 = vmatpush.msra.mxu0 %v47
  %263 = vmatpush.msra.mxu0 %v46
  %264 = vmatpush.msra.mxu0 %v45
  %265 = vmatpush.msra.mxu0 %v44
  %266 = vmatpush.msra.mxu0 %v43
  %267 = vmatmul.f32.gmra.mxu0 %v15
  %v268 = vpop.f32.mrf.mxu0
  %v269 = vadd.f32 %v249, %v268
  %270 = vdwg.mxu0
  %271 = vmatpush.msra.mxu0 %v74
  %272 = vmatpush.msra.mxu0 %v73
  %273 = vmatpush.msra.mxu0 %v72
  %274 = vmatpush.msra.mxu0 %v71
  %275 = vmatpush.msra.mxu0 %v70
  %276 = vmatpush.msra.mxu0 %v69
  %277 = vmatpush.msra.mxu0 %v68
  %278 = vmatpush.msra.mxu0 %v67
  %279 = vmatpush.msra.mxu0 %v66
  %280 = vmatpush.msra.mxu0 %v65
  %281 = vmatpush.msra.mxu0 %v64
  %282 = vmatpush.msra.mxu0 %v63
  %283 = vmatpush.msra.mxu0 %v62
  %284 = vmatpush.msra.mxu0 %v61
  %285 = vmatpush.msra.mxu0 %v60
  %286 = vmatpush.msra.mxu0 %v59
  %287 = vmatmul.f32.gmra.mxu0 %v16
  %v288 = vpop.f32.mrf.mxu0
  %v289 = vadd.f32 %v269, %v288
  %290 = vdwg.mxu0
  %291 = vmatpush.msra.mxu0 %v90
  %292 = vmatpush.msra.mxu0 %v89
  %293 = vmatpush.msra.mxu0 %v88
  %294 = vmatpush.msra.mxu0 %v87
  %295 = vmatpush.msra.mxu0 %v86
  %296 = vmatpush.msra.mxu0 %v85
  %297 = vmatpush.msra.mxu0 %v84
  %298 = vmatpush.msra.mxu0 %v83
  %299 = vmatpush.msra.mxu0 %v82
  %300 = vmatpush.msra.mxu0 %v81
  %301 = vmatpush.msra.mxu0 %v80
  %302 = vmatpush.msra.mxu0 %v79
  %303 = vmatpush.msra.mxu0 %v78
  %304 = vmatpush.msra.mxu0 %v77
  %305 = vmatpush.msra.mxu0 %v76
  %306 = vmatpush.msra.mxu0 %v75
  %307 = vmatmul.f32.gmra.mxu0 %v17
  %v308 = vpop.f32.mrf.mxu0
  %v309 = vadd.f32 %v289, %v308
  %310 = vdwg.mxu0
  %311 = vmatpush.msra.mxu0 %v106
  %312 = vmatpush.msra.mxu0 %v105
  %313 = vmatpush.msra.mxu0 %v104
  %314 = vmatpush.msra.mxu0 %v103
  %315 = vmatpush.msra.mxu0 %v102
  %316 = vmatpush.msra.mxu0 %v101
  %317 = vmatpush.msra.mxu0 %v100
  %318 = vmatpush.msra.mxu0 %v99
  %319 = vmatpush.msra.mxu0 %v98
  %320 = vmatpush.msra.mxu0 %v97
  %321 = vmatpush.msra.mxu0 %v96
  %322 = vmatpush.msra.mxu0 %v95
  %323 = vmatpush.msra.mxu0 %v94
  %324 = vmatpush.msra.mxu0 %v93
  %325 = vmatpush.msra.mxu0 %v92
  %326 = vmatpush.msra.mxu0 %v91
  %327 = vmatmul.f32.gmra.mxu0 %v18
  %v328 = vpop.f32.mrf.mxu0
  %v329 = vadd.f32 %v309, %v328
  %330 = vdwg.mxu0
  %331 = vmatpush.msra.mxu0 %v122
  %332 = vmatpush.msra.mxu0 %v121
  %333 = vmatpush.msra.mxu0 %v120
  %334 = vmatpush.msra.mxu0 %v119
  %335 = vmatpush.msra.mxu0 %v118
  %336 = vmatpush.msra.mxu0 %v117
  %337 = vmatpush.msra.mxu0 %v116
  %338 = vmatpush.msra.mxu0 %v115
  %339 = vmatpush.msra.mxu0 %v114
  %340 = vmatpush.msra.mxu0 %v113
  %341 = vmatpush.msra.mxu0 %v112
  %342 = vmatpush.msra.mxu0 %v111
  %343 = vmatpush.msra.mxu0 %v110
  %344 = vmatpush.msra.mxu0 %v109
  %345 = vmatpush.msra.mxu0 %v108
  %346 = vmatpush.msra.mxu0 %v107
  %347 = vmatmul.f32.gmra.mxu0 %v19
  %v348 = vpop.f32.mrf.mxu0
  %v349 = vadd.f32 %v329, %v348
  %350 = vdwg.mxu0
  %351 = vmatpush.msra.mxu0 %v138
  %352 = vmatpush.msra.mxu0 %v137
  %353 = vmatpush.msra.mxu0 %v136
  %354 = vmatpush.msra.mxu0 %v135
  %355 = vmatpush.msra.mxu0 %v134
  %356 = vmatpush.msra.mxu0 %v133
  %357 = vmatpush.msra.mxu0 %v132
  %358 = vmatpush.msra.mxu0 %v131
  %359 = vmatpush.msra.mxu0 %v130
  %360 = vmatpush.msra.mxu0 %v129
  %361 = vmatpush.msra.mxu0 %v128
  %362 = vmatpush.msra.mxu0 %v127
  %363 = vmatpush.msra.mxu0 %v126
  %364 = vmatpush.msra.mxu0 %v125
  %365 = vmatpush.msra.mxu0 %v124
  %366 = vmatpush.msra.mxu0 %v123
  %367 = vmatmul.f32.gmra.mxu0 %v20
  %v368 = vpop.f32.mrf.mxu0
  %v369 = vadd.f32 %v349, %v368
  %370 = vdwg.mxu0
  %371 = vmatpush.msra.mxu0 %v154
  %372 = vmatpush.msra.mxu0 %v153
  %373 = vmatpush.msra.mxu0 %v152
  %374 = vmatpush.msra.mxu0 %v151
  %375 = vmatpush.msra.mxu0 %v150
  %376 = vmatpush.msra.mxu0 %v149
  %377 = vmatpush.msra.mxu0 %v148
  %378 = vmatpush.msra.mxu0 %v147
  %379 = vmatpush.msra.mxu0 %v146
  %380 = vmatpush.msra.mxu0 %v145
  %381 = vmatpush.msra.mxu0 %v144
  %382 = vmatpush.msra.mxu0 %v143
  %383 = vmatpush.msra.mxu0 %v142
  %384 = vmatpush.msra.mxu0 %v141
  %385 = vmatpush.msra.mxu0 %v140
  %386 = vmatpush.msra.mxu0 %v139
  %387 = vmatmul.f32.gmra.mxu0 %v21
  %v388 = vpop.f32.mrf.mxu0
  %v389 = vadd.f32 %v369, %v388
  %390 = vdwg.mxu0
  %391 = vmatpush.msra.mxu0 %v170
  %392 = vmatpush.msra.mxu0 %v169
  %393 = vmatpush.msra.mxu0 %v168
  %394 = vmatpush.msra.mxu0 %v167
  %395 = vmatpush.msra.mxu0 %v166
  %396 = vmatpush.msra.mxu0 %v165
  %397 = vmatpush.msra.mxu0 %v164
  %398 = vmatpush.msra.mxu0 %v163
  %399 = vmatpush.msra.mxu0 %v162
  %400 = vmatpush.msra.mxu0 %v161
  %401 = vmatpush.msra.mxu0 %v160
  %402 = vmatpush.msra.mxu0 %v159
  %403 = vmatpush.msra.mxu0 %v158
  %404 = vmatpush.msra.mxu0 %v157
  %405 = vmatpush.msra.mxu0 %v156
  %406 = vmatpush.msra.mxu0 %v155
  %407 = vmatmul.f32.gmra.mxu0 %v22
  %v408 = vpop.f32.mrf.mxu0
  %v409 = vadd.f32 %v389, %v408
  %410 = vdwg.mxu0
  %411 = vmatpush.msra.mxu0 %v186
  %412 = vmatpush.msra.mxu0 %v185
  %413 = vmatpush.msra.mxu0 %v184
  %414 = vmatpush.msra.mxu0 %v183
  %415 = vmatpush.msra.mxu0 %v182
  %416 = vmatpush.msra.mxu0 %v181
  %417 = vmatpush.msra.mxu0 %v180
  %418 = vmatpush.msra.mxu0 %v179
  %419 = vmatpush.msra.mxu0 %v178
  %420 = vmatpush.msra.mxu0 %v177
  %421 = vmatpush.msra.mxu0 %v176
  %422 = vmatpush.msra.mxu0 %v175
  %423 = vmatpush.msra.mxu0 %v174
  %424 = vmatpush.msra.mxu0 %v173
  %425 = vmatpush.msra.mxu0 %v172
  %426 = vmatpush.msra.mxu0 %v171
  %427 = vmatmul.f32.gmra.mxu0 %v23
  %v428 = vpop.f32.mrf.mxu0
  %v429 = vadd.f32 %v409, %v428
  %430 = vdwg.mxu0
  %431 = vmatpush.msra.mxu0 %v202
  %432 = vmatpush.msra.mxu0 %v201
  %433 = vmatpush.msra.mxu0 %v200
  %434 = vmatpush.msra.mxu0 %v199
  %435 = vmatpush.msra.mxu0 %v198
  %436 = vmatpush.msra.mxu0 %v197
  %437 = vmatpush.msra.mxu0 %v196
  %438 = vmatpush.msra.mxu0 %v195
  %439 = vmatpush.msra.mxu0 %v194
  %440 = vmatpush.msra.mxu0 %v193
  %441 = vmatpush.msra.mxu0 %v192
  %442 = vmatpush.msra.mxu0 %v191
  %443 = vmatpush.msra.mxu0 %v190
  %444 = vmatpush.msra.mxu0 %v189
  %445 = vmatpush.msra.mxu0 %v188
  %446 = vmatpush.msra.mxu0 %v187
  %447 = vmatmul.f32.gmra.mxu0 %v24
  %v448 = vpop.f32.mrf.mxu0
  %v449 = vadd.f32 %v429, %v448
  %450 = vdwg.mxu0
  %451 = vmatpush.msra.mxu0 %v218
  %452 = vmatpush.msra.mxu0 %v217
  %453 = vmatpush.msra.mxu0 %v216
  %454 = vmatpush.msra.mxu0 %v215
  %455 = vmatpush.msra.mxu0 %v214
  %456 = vmatpush.msra.mxu0 %v213
  %457 = vmatpush.msra.mxu0 %v212
  %458 = vmatpush.msra.mxu0 %v211
  %459 = vmatpush.msra.mxu0 %v210
  %460 = vmatpush.msra.mxu0 %v209
  %461 = vmatpush.msra.mxu0 %v208
  %462 = vmatpush.msra.mxu0 %v207
  %463 = vmatpush.msra.mxu0 %v206
  %464 = vmatpush.msra.mxu0 %v205
  %465 = vmatpush.msra.mxu0 %v204
  %466 = vmatpush.msra.mxu0 %v203
  %467 = vmatmul.f32.gmra.mxu0 %v25
  %v468 = vpop.f32.mrf.mxu0
  %v469 = vadd.f32 %v449, %v468
  %470 = vdwg.mxu0
  %471 = vmatpush.msra.mxu0 0.0
  %472 = vmatpush.msra.mxu0 0.0
  %473 = vmatpush.msra.mxu0 0.0
  %474 = vmatpush.msra.mxu0 0.0
  %475 = vmatpush.msra.mxu0 0.0
  %476 = vmatpush.msra.mxu0 0.0
  %477 = vmatpush.msra.mxu0 0.0
  %478 = vmatpush.msra.mxu0 0.0
  %479 = vmatpush.msra.mxu0 0.0
  %480 = vmatpush.msra.mxu0 0.0
  %481 = vmatpush.msra.mxu0 0.0
  %482 = vmatpush.msra.mxu0 0.0
  %483 = vmatpush.msra.mxu0 %v222
  %484 = vmatpush.msra.mxu0 %v221
  %485 = vmatpush.msra.mxu0 %v220
  %486 = vmatpush.msra.mxu0 %v219
  %487 = vmatmul.f32.gmra.mxu0 %v229
  %v488 = vpop.f32.mrf.mxu0
  %v489 = vadd.f32 %v469, %v488
  %490 = vdwg.mxu0
  %v491 = vmax.f32 %v489, 0.0
  %492 = vst.msk [vmem:[%s3] sm:$0xff] %vm227, %v491
  // Predicated region
  $region14: #{cnn_block_forward.7} parent=0 // pred_check
    _
  $region15: #{cnn_block_forward.7} parent=0 // pred_check_branch
    %494 = sbr.rel (0) target = $region17
  $region16: #{cnn_block_forward.7} parent=0 // pred_region
    _
  $region17: #{cnn_block_forward.7} parent=0 // pred_fallthru
    _
  // Predicated region
  $region18: #{cnn_block_forward.7} parent=0 // pred_check
    _
  $region19: #{cnn_block_forward.7} parent=0 // pred_check_branch
    %496 = sbr.rel (0) target = $region21
  $region20: #{cnn_block_forward.7} parent=0 // pred_region
    _
  $region21: #{cnn_block_forward.7} parent=0 // pred_fallthru
    _

</llo_original>
